<compile_context>
chip_gen: v7x
topology: tpu7x:2x2x1
jax: 0.10.0
libtpu: 0.0.40
codegen_flags: <defaults>
</compile_context>

<pallas_src>
import functools

import jax
import jax.numpy as jnp
from jax.experimental import pallas as pl
from jax.experimental.pallas import tpu as pltpu


def find_multiple(n: int, k: int) -> int:
    if n % k == 0:
        return n
    return n + k - n % k


def _round_up(n: int, k: int) -> int:
    return (n + k - 1) // k * k


def _pick_h_tile(H: int) -> int:
    # H is always a multiple of 256 for this module (find_multiple(n, 256)),
    # but fall back gracefully anyway.
    for cand in (1024, 512, 256, 128):
        if H % cand == 0:
            return cand
    return H


def llama_mlp_kernel(x_ref, wg_ref, w3_ref, o_ref, acc_ref):
    # x_ref:  (tm, C)      bf16 token tile (resident across the H axis)
    # wg_ref: (C, 2*th)    bf16 fused gate weight chunk [W1_tile | W2_tile]
    # w3_ref: (th, C)      bf16 down-projection weight chunk
    # o_ref:  (tm, C)      output tile (written once, at the last H step)
    # acc_ref:(tm, C) f32  VMEM accumulator
    h_idx = pl.program_id(1)

    @pl.when(h_idx == 0)
    def _():
        acc_ref[...] = jnp.zeros_like(acc_ref)

    x = x_ref[...]                                           # bf16
    # Single fused gate matmul -> (tm, 2*th) in f32.
    g = jnp.dot(x, wg_ref[...], preferred_element_type=jnp.float32)
    th = g.shape[1] // 2
    h1 = g[:, :th]
    h2 = g[:, th:]
    # SwiGLU gate in f32.
    gate = (h1 * jax.nn.sigmoid(h1)) * h2

    # Accumulate the partial down-projection for this H chunk.
    acc_ref[...] += jnp.dot(gate.astype(jnp.bfloat16), w3_ref[...],
                            preferred_element_type=jnp.float32)

    @pl.when(h_idx == pl.num_programs(1) - 1)
    def _():
        o_ref[...] = acc_ref[...].astype(o_ref.dtype)


@functools.partial(jax.jit, static_argnames=("tm",))
def llama_mlp(x, w1_t, w2_t, w3_t, *, tm=256):
    """x: (B, N, C).  w1_t/w2_t: (C, H), w3_t: (H, C) (pre-transposed Linear weights)."""
    B, N, C = x.shape
    H = w1_t.shape[1]
    M = B * N

    th = _pick_h_tile(H)
    n_h_tiles = H // th

    # Adapt the row tile to M (multiple of 128 for MXU/layout friendliness),
    # then pad the token dim so divisibility is never a constraint.
    tm = min(tm, max(128, _round_up(M, 128)))
    M_pad = _round_up(max(M, 1), tm)
    x2d = x.reshape(M, C).astype(jnp.bfloat16)
    if M_pad != M:
        x2d = jnp.pad(x2d, ((0, M_pad - M), (0, 0)))

    # Fuse W1/W2 into one gate weight, grouped per H-tile:
    # columns [h*2*th : (h+1)*2*th] == [W1[:, h*th:(h+1)*th], W2[:, h*th:(h+1)*th]]
    w1b = w1_t.astype(jnp.bfloat16).reshape(C, n_h_tiles, th)
    w2b = w2_t.astype(jnp.bfloat16).reshape(C, n_h_tiles, th)
    w_gate = jnp.concatenate([w1b, w2b], axis=2).reshape(C, 2 * H)
    w3b = w3_t.astype(jnp.bfloat16)

    grid = (M_pad // tm, n_h_tiles)

    # VMEM budget: double-buffered x / weight / out tiles + f32 accumulator.
    bytes_x = 2 * tm * C * 2
    bytes_wg = 2 * C * (2 * th) * 2
    bytes_w3 = 2 * th * C * 2
    bytes_out = 2 * tm * C * 4
    bytes_acc = tm * C * 4
    vmem_limit = int(1.5 * (bytes_x + bytes_wg + bytes_w3 + bytes_out + bytes_acc))
    vmem_limit = min(max(vmem_limit, 16 * 1024 * 1024), 100 * 1024 * 1024)

    cost = pl.CostEstimate(
        flops=6 * M * C * H,                      # 2*M*C*2H (gate) + 2*M*H*C (proj)
        transcendentals=M * H,                    # sigmoid
        bytes_accessed=(M * C * 2                 # x (bf16)
                        + (2 * C * H + H * C) * 2 # weights (bf16)
                        + M * C * x.dtype.itemsize))

    out2d = pl.pallas_call(
        llama_mlp_kernel,
        out_shape=jax.ShapeDtypeStruct((M_pad, C), x.dtype),
        grid_spec=pltpu.PrefetchScalarGridSpec(
            num_scalar_prefetch=0,
            grid=grid,
            in_specs=[
                pl.BlockSpec((tm, C), lambda i, h: (i, 0)),       # x tile
                pl.BlockSpec((C, 2 * th), lambda i, h: (0, h)),   # fused gate W
                pl.BlockSpec((th, C), lambda i, h: (h, 0)),       # W3 chunk
            ],
            out_specs=pl.BlockSpec((tm, C), lambda i, h: (i, 0)),
            scratch_shapes=[pltpu.VMEM((tm, C), jnp.float32)],
        ),
        compiler_params=pltpu.CompilerParams(
            dimension_semantics=("parallel", "arbitrary"),
            vmem_limit_bytes=vmem_limit),
        cost_estimate=cost,
    )(x2d, w_gate, w3b)

    return out2d[:M].reshape(B, N, C)


def reference_mlp_f32(x, w1_t, w2_t, w3_t):
    h1 = x @ w1_t
    h2 = x @ w2_t
    h = jax.nn.silu(h1) * h2
    return h @ w3_t


def reference_mlp_bf16(x, w1_t, w2_t, w3_t):
    # Mirrors the kernel's numerics: bf16 MXU inputs, f32 accumulation,
    # f32 gate, bf16 re-cast before the down-projection.
    xb = x.astype(jnp.bfloat16)
    h1 = jnp.dot(xb, w1_t.astype(jnp.bfloat16), preferred_element_type=jnp.float32)
    h2 = jnp.dot(xb, w2_t.astype(jnp.bfloat16), preferred_element_type=jnp.float32)
    g = (h1 * jax.nn.sigmoid(h1)) * h2
    return jnp.dot(g.astype(jnp.bfloat16), w3_t.astype(jnp.bfloat16),
                   preferred_element_type=jnp.float32)


if __name__ == "__main__":
    # Shapes implied by the module: n_embd = in_features, hidden_dim = 4*n_embd,
    # n_hidden = find_multiple(int(2*hidden_dim/3), 256).
    B, N = 2, 64
    n_embd = 128
    hidden_dim = 4 * n_embd
    n_hidden = find_multiple(int(2 * hidden_dim / 3), 256)   # -> 512

    key = jax.random.PRNGKey(0)
    kx, k1, k2, k3 = jax.random.split(key, 4)

    x = jax.random.normal(kx, (B, N, n_embd), dtype=jnp.float32)

    # nn.Linear(n_embd, n_hidden).weight has shape (n_hidden, n_embd); store the
    # transpose (in, out) for row-major matmuls in the kernel.
    scale1 = 1.0 / jnp.sqrt(n_embd)
    scale3 = 1.0 / jnp.sqrt(n_hidden)
    w1_t = (jax.random.uniform(k1, (n_embd, n_hidden), jnp.float32,
                               minval=-1.0, maxval=1.0) * scale1)
    w2_t = (jax.random.uniform(k2, (n_embd, n_hidden), jnp.float32,
                               minval=-1.0, maxval=1.0) * scale1)
    w3_t = (jax.random.uniform(k3, (n_hidden, n_embd), jnp.float32,
                               minval=-1.0, maxval=1.0) * scale3)

    y = llama_mlp(x, w1_t, w2_t, w3_t)
    y = jax.block_until_ready(y)
    assert y.shape == (B, N, n_embd)

    # Tight check against a bf16-numerics reference (same casting as the kernel).
    y_bf16_ref = reference_mlp_bf16(x.reshape(-1, n_embd), w1_t, w2_t, w3_t)
    y_bf16_ref = y_bf16_ref.reshape(B, N, n_embd).astype(y.dtype)
    assert jnp.allclose(y, y_bf16_ref, atol=1e-2, rtol=1e-2), \
        "mismatch vs bf16-numerics reference"

    # Loose sanity check against the full-f32 reference (bf16 quantization error).
    y_f32_ref = reference_mlp_f32(x, w1_t, w2_t, w3_t)
    assert jnp.allclose(y, y_f32_ref, atol=5e-2, rtol=5e-2), \
        "mismatch vs f32 reference"

    print("KERNEL_OK")
</pallas_src>

<mosaic_0001>
module attributes {stable_mosaic.version = 11 : i64} {
  func.func @llama_mlp_kernel(%arg0: i32, %arg1: i32, %arg2: memref<128x128xbf16, #tpu.memory_space<vmem>>, %arg3: memref<128x1024xbf16, #tpu.memory_space<vmem>>, %arg4: memref<512x128xbf16, #tpu.memory_space<vmem>>, %arg5: memref<128x128xf32, #tpu.memory_space<vmem>>, %arg6: memref<128x128xf32, #tpu.memory_space<vmem>>) attributes {dimension_semantics = [#tpu.dimension_semantics<parallel>, #tpu.dimension_semantics<arbitrary>], iteration_bounds = array<i64: 1, 1>, scalar_prefetch = 0 : i64, scratch_operands = 1 : i64, tpu.core_type = #tpu.core_type<tc>, window_params = [{transform_indices = @transform_0, window_bounds = array<i64: 128, 128>}, {transform_indices = @transform_1, window_bounds = array<i64: 128, 1024>}, {transform_indices = @transform_2, window_bounds = array<i64: 512, 128>}, {transform_indices = @transform_3, window_bounds = array<i64: 128, 128>}]} {
    %c0_i32 = arith.constant 0 : i32
    %0 = arith.cmpi eq, %arg1, %c0_i32 : i32
    %1 = arith.extui %0 : i1 to i32
    %c0_i32_0 = arith.constant 0 : i32
    %2 = arith.cmpi ne, %1, %c0_i32_0 : i32
    scf.if %2 {
      %cst_14 = arith.constant 0.000000e+00 : f32
      %24 = vector.broadcast %cst_14 : f32 to vector<128x128xf32>
      %c0_15 = arith.constant 0 : index
      %c0_16 = arith.constant 0 : index
      %25 = vector.load %arg6[%c0_15, %c0_16] : memref<128x128xf32, #tpu.memory_space<vmem>>, vector<128x128xf32>
      tpu.vector_store %arg6[%c0_15, %c0_16], %24 {strides = array<i32>} : memref<128x128xf32, #tpu.memory_space<vmem>>, vector<128x128xf32>,
    } else {
    }
    %c0 = arith.constant 0 : index
    %c0_1 = arith.constant 0 : index
    %3 = vector.load %arg2[%c0, %c0_1] : memref<128x128xbf16, #tpu.memory_space<vmem>>, vector<128x128xbf16>
    %c0_2 = arith.constant 0 : index
    %c0_3 = arith.constant 0 : index
    %4 = vector.load %arg3[%c0_2, %c0_3] : memref<128x1024xbf16, #tpu.memory_space<vmem>>, vector<128x1024xbf16>
    %cst = arith.constant dense<0.000000e+00> : vector<128x1024xf32>
    %5 = tpu.matmul %3, %4, %cst {dimension_numbers = #tpu.dot_dimension_numbers<[1], [0], [0], [1], [0, 0, 1, 1], [], []>} : vector<128x128xbf16>, vector<128x1024xbf16>, vector<128x1024xf32> -> vector<128x1024xf32>
    %6 = vector.extract_strided_slice %5 {offsets = [0, 0], sizes = [128, 512], strides = [1, 1]} : vector<128x1024xf32> to vector<128x512xf32>
    %7 = vector.extract_strided_slice %5 {offsets = [0, 512], sizes = [128, 512], strides = [1, 1]} : vector<128x1024xf32> to vector<128x512xf32>
    %8 = arith.negf %6 : vector<128x512xf32>
    %9 = math.exp %8 : vector<128x512xf32>
    %cst_4 = arith.constant 1.000000e+00 : f32
    %10 = vector.broadcast %cst_4 : f32 to vector<128x512xf32>
    %11 = arith.addf %10, %9 : vector<128x512xf32>
    %12 = arith.divf %10, %11 : vector<128x512xf32>
    %13 = arith.mulf %6, %12 : vector<128x512xf32>
    %14 = arith.mulf %13, %7 : vector<128x512xf32>
    %c0_5 = arith.constant 0 : index
    %c0_6 = arith.constant 0 : index
    %15 = vector.load %arg6[%c0_5, %c0_6] : memref<128x128xf32, #tpu.memory_space<vmem>>, vector<128x128xf32>
    %16 = arith.truncf %14 : vector<128x512xf32> to vector<128x512xbf16>
    %c0_7 = arith.constant 0 : index
    %c0_8 = arith.constant 0 : index
    %17 = vector.load %arg4[%c0_7, %c0_8] : memref<512x128xbf16, #tpu.memory_space<vmem>>, vector<512x128xbf16>
    %cst_9 = arith.constant dense<0.000000e+00> : vector<128x128xf32>
    %18 = tpu.matmul %16, %17, %cst_9 {dimension_numbers = #tpu.dot_dimension_numbers<[1], [0], [0], [1], [0, 0, 1, 1], [], []>} : vector<128x512xbf16>, vector<512x128xbf16>, vector<128x128xf32> -> vector<128x128xf32>
    %19 = arith.addf %15, %18 : vector<128x128xf32>
    %c0_10 = arith.constant 0 : index
    %c0_11 = arith.constant 0 : index
    %20 = vector.load %arg6[%c0_10, %c0_11] : memref<128x128xf32, #tpu.memory_space<vmem>>, vector<128x128xf32>
    tpu.vector_store %arg6[%c0_10, %c0_11], %19 {strides = array<i32>} : memref<128x128xf32, #tpu.memory_space<vmem>>, vector<128x128xf32>,
    %c0_i32_12 = arith.constant 0 : i32
    %21 = arith.cmpi eq, %arg1, %c0_i32_12 : i32
    %22 = arith.extui %21 : i1 to i32
    %c0_i32_13 = arith.constant 0 : i32
    %23 = arith.cmpi ne, %22, %c0_i32_13 : i32
    scf.if %23 {
      %c0_14 = arith.constant 0 : index
      %c0_15 = arith.constant 0 : index
      %24 = vector.load %arg6[%c0_14, %c0_15] : memref<128x128xf32, #tpu.memory_space<vmem>>, vector<128x128xf32>
      %c0_16 = arith.constant 0 : index
      %c0_17 = arith.constant 0 : index
      %25 = vector.load %arg5[%c0_16, %c0_17] : memref<128x128xf32, #tpu.memory_space<vmem>>, vector<128x128xf32>
      tpu.vector_store %arg5[%c0_16, %c0_17], %24 {strides = array<i32>} : memref<128x128xf32, #tpu.memory_space<vmem>>, vector<128x128xf32>,
    } else {
    }
    return
  }
  func.func @transform_0(%arg0: i32, %arg1: i32) -> (i32, i32) {
    %c0_i32 = arith.constant 0 : i32
    %c0_i32_0 = arith.constant 0 : i32
    return %arg0, %c0_i32 : i32, i32
  }
  func.func @transform_1(%arg0: i32, %arg1: i32) -> (i32, i32) {
    %c0_i32 = arith.constant 0 : i32
    %c0_i32_0 = arith.constant 0 : i32
    return %c0_i32, %arg1 : i32, i32
  }
  func.func @transform_2(%arg0: i32, %arg1: i32) -> (i32, i32) {
    %c0_i32 = arith.constant 0 : i32
    %c0_i32_0 = arith.constant 0 : i32
    return %arg1, %c0_i32 : i32, i32
  }
  func.func @transform_3(%arg0: i32, %arg1: i32) -> (i32, i32) {
    %c0_i32 = arith.constant 0 : i32
    %c0_i32_0 = arith.constant 0 : i32
    return %arg0, %c0_i32 : i32, i32
  }
}

</mosaic_0001>

<llo_original>
// kernel: llama_mlp.1
$region0: #{llama_mlp.1}
  #allocation0 [shape = 'u32[]', space=smem, size = 0x4, offset = 0x4, fixed_abs, tag = 'smem constant byte address 0x4 - core index']
  #allocation1 [shape = 'u32[144,128]{1,0:T(1,128)}', space=vmem, size = 0x12000, scoped, tag = 'internal scratch']
  #allocation2 [shape = 'f32[128,128]{1,0:T(8,128)}', space=vmem, size = 0x10000, scoped, tag = 'scratch operand']
  %s0 = inlined_call_operand.vmem [shape: bf16[128,128], index: 0, kind: input, shape index: {}]
  %s1 = inlined_call_operand.vmem [shape: bf16[128,1024], index: 1, kind: input, shape index: {}]
  %s2 = inlined_call_operand.vmem [shape: bf16[512,128], index: 2, kind: input, shape index: {}]
  %s3 = inlined_call_operand.hbm [shape: f32[128,128], index: 3, kind: output, shape index: {}]
  %s4 = sld [smem:[#allocation0]]
  $region30: #{llama_mlp.1} parent=0
    _
  %s6 = ssub.s32 1, %s4
  %s7 = scalar_select 0, %s6, %s4
  $region1: #{llama_mlp.1} parent=0
    #allocation3 [shape = 'u8[65536]{0}', space=vmem, size = 0x10000, scoped, tag = 'output window, operand 0, single buffered']
    #allocation4 [shape = 's32[1]{0}', space=sflag, size = 0x4, scoped, tag = 'scoped memory for llama_mlp.1']
    %8 = vsyncpa [#allocation4], 0
    // Predicated region
    $region2: #{llama_mlp.1} parent=1 // pred_check
      _
    $region3: #{llama_mlp.1} parent=1 // pred_check_branch
      %10 = sbr.rel (0) target = $region5
    $region4: #{llama_mlp.1} parent=1 // pred_region
      _
    $region5: #{llama_mlp.1} parent=1 // pred_fallthru
      _
    // Predicated region
    $region6: #{llama_mlp.1} parent=1 // pred_check
      _
    $region7: #{llama_mlp.1} parent=1 // pred_check_branch
      %12 = sbr.rel (0) target = $region9
    $region8: #{llama_mlp.1} parent=1 // pred_region
      _
    $region9: #{llama_mlp.1} parent=1 // pred_fallthru
      _
    // Predicated region
    $region10: #{llama_mlp.1} parent=1 // pred_check
      _
    $region11: #{llama_mlp.1} parent=1 // pred_check_branch
      %14 = sbr.rel (0) target = $region13
    $region12: #{llama_mlp.1} parent=1 // pred_region
      _
    $region13: #{llama_mlp.1} parent=1 // pred_fallthru
      _
    %p16 = scmp.eq.s32.totalorder 0, 0
    // Predicated region
    $region14: #{llama_mlp.1} parent=1 // pred_check
      %p17 = pneg %p16
    $region15: #{llama_mlp.1} parent=1 // pred_check_branch
      %19 = sbr.rel (%p17) target = $region17
    $region16: #{llama_mlp.1} parent=1 // pred_region
      %20 = vst [vmem:[#allocation2] sm:$0xff] 0.0
      %21 = vst [vmem:[#allocation2 + $0x8] sm:$0xff] 0.0
      %22 = vst [vmem:[#allocation2 + $0x10] sm:$0xff] 0.0
      %23 = vst [vmem:[#allocation2 + $0x18] sm:$0xff] 0.0
      %24 = vst [vmem:[#allocation2 + $0x20] sm:$0xff] 0.0
      %25 = vst [vmem:[#allocation2 + $0x28] sm:$0xff] 0.0
      %26 = vst [vmem:[#allocation2 + $0x30] sm:$0xff] 0.0
      %27 = vst [vmem:[#allocation2 + $0x38] sm:$0xff] 0.0
      %28 = vst [vmem:[#allocation2 + $0x40] sm:$0xff] 0.0
      %29 = vst [vmem:[#allocation2 + $0x48] sm:$0xff] 0.0
      %30 = vst [vmem:[#allocation2 + $0x50] sm:$0xff] 0.0
      %31 = vst [vmem:[#allocation2 + $0x58] sm:$0xff] 0.0
      %32 = vst [vmem:[#allocation2 + $0x60] sm:$0xff] 0.0
      %33 = vst [vmem:[#allocation2 + $0x68] sm:$0xff] 0.0
      %34 = vst [vmem:[#allocation2 + $0x70] sm:$0xff] 0.0
      %35 = vst [vmem:[#allocation2 + $0x78] sm:$0xff] 0.0
    $region17: #{llama_mlp.1} parent=1 // pred_fallthru
      _
    %v36 = vld [vmem:[%s0] sm:$0xf]
    %v37 = vld [vmem:[%s0 + $0x4] sm:$0xf]
    %v38 = vld [vmem:[%s0 + $0x8] sm:$0xf]
    %v39 = vld [vmem:[%s0 + $0xc] sm:$0xf]
    %v40 = vld [vmem:[%s0 + $0x10] sm:$0xf]
    %v41 = vld [vmem:[%s0 + $0x14] sm:$0xf]
    %v42 = vld [vmem:[%s0 + $0x18] sm:$0xf]
    %v43 = vld [vmem:[%s0 + $0x1c] sm:$0xf]
    %v44 = vld [vmem:[%s0 + $0x20] sm:$0xf]
    %v45 = vld [vmem:[%s0 + $0x24] sm:$0xf]
    %v46 = vld [vmem:[%s0 + $0x28] sm:$0xf]
    %v47 = vld [vmem:[%s0 + $0x2c] sm:$0xf]
    %v48 = vld [vmem:[%s0 + $0x30] sm:$0xf]
    %v49 = vld [vmem:[%s0 + $0x34] sm:$0xf]
    %v50 = vld [vmem:[%s0 + $0x38] sm:$0xf]
    %v51 = vld [vmem:[%s0 + $0x3c] sm:$0xf]
    %v52 = vld [vmem:[%s1] sm:$0xff]
    %v53 = vld [vmem:[%s1 + $0x8] sm:$0xff]
    %v54 = vld [vmem:[%s1 + $0x10] sm:$0xff]
    %v55 = vld [vmem:[%s1 + $0x18] sm:$0xff]
    %v56 = vld [vmem:[%s1 + $0x20] sm:$0xff]
    %v57 = vld [vmem:[%s1 + $0x28] sm:$0xff]
    %v58 = vld [vmem:[%s1 + $0x30] sm:$0xff]
    %v59 = vld [vmem:[%s1 + $0x38] sm:$0xff]
    %v60 = vld [vmem:[%s1 + $0x40] sm:$0xff]
    %v61 = vld [vmem:[%s1 + $0x48] sm:$0xff]
    %v62 = vld [vmem:[%s1 + $0x50] sm:$0xff]
    %v63 = vld [vmem:[%s1 + $0x58] sm:$0xff]
    %v64 = vld [vmem:[%s1 + $0x60] sm:$0xff]
    %v65 = vld [vmem:[%s1 + $0x68] sm:$0xff]
    %v66 = vld [vmem:[%s1 + $0x70] sm:$0xff]
    %v67 = vld [vmem:[%s1 + $0x78] sm:$0xff]
    %v68 = vld [vmem:[%s1 + $0x80] sm:$0xff]
    %v69 = vld [vmem:[%s1 + $0x88] sm:$0xff]
    %v70 = vld [vmem:[%s1 + $0x90] sm:$0xff]
    %v71 = vld [vmem:[%s1 + $0x98] sm:$0xff]
    %v72 = vld [vmem:[%s1 + $0xa0] sm:$0xff]
    %v73 = vld [vmem:[%s1 + $0xa8] sm:$0xff]
    %v74 = vld [vmem:[%s1 + $0xb0] sm:$0xff]
    %v75 = vld [vmem:[%s1 + $0xb8] sm:$0xff]
    %v76 = vld [vmem:[%s1 + $0xc0] sm:$0xff]
    %v77 = vld [vmem:[%s1 + $0xc8] sm:$0xff]
    %v78 = vld [vmem:[%s1 + $0xd0] sm:$0xff]
    %v79 = vld [vmem:[%s1 + $0xd8] sm:$0xff]
    %v80 = vld [vmem:[%s1 + $0xe0] sm:$0xff]
    %v81 = vld [vmem:[%s1 + $0xe8] sm:$0xff]
    %v82 = vld [vmem:[%s1 + $0xf0] sm:$0xff]
    %v83 = vld [vmem:[%s1 + $0xf8] sm:$0xff]
    %v84 = vld [vmem:[%s1 + $0x100] sm:$0xff]
    %v85 = vld [vmem:[%s1 + $0x108] sm:$0xff]
    %v86 = vld [vmem:[%s1 + $0x110] sm:$0xff]
    %v87 = vld [vmem:[%s1 + $0x118] sm:$0xff]
    %v88 = vld [vmem:[%s1 + $0x120] sm:$0xff]
    %v89 = vld [vmem:[%s1 + $0x128] sm:$0xff]
    %v90 = vld [vmem:[%s1 + $0x130] sm:$0xff]
    %v91 = vld [vmem:[%s1 + $0x138] sm:$0xff]
    %v92 = vld [vmem:[%s1 + $0x140] sm:$0xff]
    %v93 = vld [vmem:[%s1 + $0x148] sm:$0xff]
    %v94 = vld [vmem:[%s1 + $0x150] sm:$0xff]
    %v95 = vld [vmem:[%s1 + $0x158] sm:$0xff]
    %v96 = vld [vmem:[%s1 + $0x160] sm:$0xff]
    %v97 = vld [vmem:[%s1 + $0x168] sm:$0xff]
    %v98 = vld [vmem:[%s1 + $0x170] sm:$0xff]
    %v99 = vld [vmem:[%s1 + $0x178] sm:$0xff]
    %v100 = vld [vmem:[%s1 + $0x180] sm:$0xff]
    %v101 = vld [vmem:[%s1 + $0x188] sm:$0xff]
    %v102 = vld [vmem:[%s1 + $0x190] sm:$0xff]
    %v103 = vld [vmem:[%s1 + $0x198] sm:$0xff]
    %v104 = vld [vmem:[%s1 + $0x1a0] sm:$0xff]
    %v105 = vld [vmem:[%s1 + $0x1a8] sm:$0xff]
    %v106 = vld [vmem:[%s1 + $0x1b0] sm:$0xff]
    %v107 = vld [vmem:[%s1 + $0x1b8] sm:$0xff]
    %v108 = vld [vmem:[%s1 + $0x1c0] sm:$0xff]
    %v109 = vld [vmem:[%s1 + $0x1c8] sm:$0xff]
    %v110 = vld [vmem:[%s1 + $0x1d0] sm:$0xff]
    %v111 = vld [vmem:[%s1 + $0x1d8] sm:$0xff]
    %v112 = vld [vmem:[%s1 + $0x1e0] sm:$0xff]
    %v113 = vld [vmem:[%s1 + $0x1e8] sm:$0xff]
    %v114 = vld [vmem:[%s1 + $0x1f0] sm:$0xff]
    %v115 = vld [vmem:[%s1 + $0x1f8] sm:$0xff]
    %v132 = vunpack.c.l.b16 %v36
    %v133 = vunpack.c.l.b16 %v37
    %v134 = vunpack.c.l.b16 %v38
    %v135 = vunpack.c.l.b16 %v39
    %v136 = vunpack.c.l.b16 %v40
    %v137 = vunpack.c.l.b16 %v41
    %v138 = vunpack.c.l.b16 %v42
    %v139 = vunpack.c.l.b16 %v43
    %v140 = vunpack.c.l.b16 %v44
    %v141 = vunpack.c.l.b16 %v45
    %v142 = vunpack.c.l.b16 %v46
    %v143 = vunpack.c.l.b16 %v47
    %v144 = vunpack.c.l.b16 %v48
    %v145 = vunpack.c.l.b16 %v49
    %v146 = vunpack.c.l.b16 %v50
    %v147 = vunpack.c.l.b16 %v51
    %v148 = vpack.c.b16 %v133, %v132
    %v149 = vpack.c.b16 %v135, %v134
    %v150 = vpack.c.b16 %v137, %v136
    %v151 = vpack.c.b16 %v139, %v138
    %v152 = vpack.c.b16 %v141, %v140
    %v153 = vpack.c.b16 %v143, %v142
    %v154 = vpack.c.b16 %v145, %v144
    %v155 = vpack.c.b16 %v147, %v146
    %v228 = vunpack.c.l.b16 %v52
    %v229 = vunpack.c.h.b16 %v52
    %v230 = vunpack.c.l.b16 %v53
    %v231 = vunpack.c.h.b16 %v53
    %v232 = vunpack.c.l.b16 %v54
    %v233 = vunpack.c.h.b16 %v54
    %v234 = vunpack.c.l.b16 %v55
    %v235 = vunpack.c.h.b16 %v55
    %v236 = vunpack.c.l.b16 %v56
    %v237 = vunpack.c.h.b16 %v56
    %v238 = vunpack.c.l.b16 %v57
    %v239 = vunpack.c.h.b16 %v57
    %v240 = vunpack.c.l.b16 %v58
    %v241 = vunpack.c.h.b16 %v58
    %v242 = vunpack.c.l.b16 %v59
    %v243 = vunpack.c.h.b16 %v59
    %v244 = vunpack.c.l.b16 %v60
    %v245 = vunpack.c.h.b16 %v60
    %v246 = vunpack.c.l.b16 %v61
    %v247 = vunpack.c.h.b16 %v61
    %v248 = vunpack.c.l.b16 %v62
    %v249 = vunpack.c.h.b16 %v62
    %v250 = vunpack.c.l.b16 %v63
    %v251 = vunpack.c.h.b16 %v63
    %v252 = vunpack.c.l.b16 %v64
    %v253 = vunpack.c.h.b16 %v64
    %v254 = vunpack.c.l.b16 %v65
    %v255 = vunpack.c.h.b16 %v65
    %v256 = vunpack.c.l.b16 %v66
    %v257 = vunpack.c.h.b16 %v66
    %v258 = vunpack.c.l.b16 %v67
    %v259 = vunpack.c.h.b16 %v67
    %v260 = vunpack.c.l.b16 %v68
    %v261 = vunpack.c.h.b16 %v68
    %v262 = vunpack.c.l.b16 %v69
    %v263 = vunpack.c.h.b16 %v69
    %v264 = vunpack.c.l.b16 %v70
    %v265 = vunpack.c.h.b16 %v70
    %v266 = vunpack.c.l.b16 %v71
    %v267 = vunpack.c.h.b16 %v71
    %v268 = vunpack.c.l.b16 %v72
    %v269 = vunpack.c.h.b16 %v72
    %v270 = vunpack.c.l.b16 %v73
    %v271 = vunpack.c.h.b16 %v73
    %v272 = vunpack.c.l.b16 %v74
    %v273 = vunpack.c.h.b16 %v74
    %v274 = vunpack.c.l.b16 %v75
    %v275 = vunpack.c.h.b16 %v75
    %v276 = vunpack.c.l.b16 %v76
    %v277 = vunpack.c.h.b16 %v76
    %v278 = vunpack.c.l.b16 %v77
    %v279 = vunpack.c.h.b16 %v77
    %v280 = vunpack.c.l.b16 %v78
    %v281 = vunpack.c.h.b16 %v78
    %v282 = vunpack.c.l.b16 %v79
    %v283 = vunpack.c.h.b16 %v79
    %v284 = vunpack.c.l.b16 %v80
    %v285 = vunpack.c.h.b16 %v80
    %v286 = vunpack.c.l.b16 %v81
    %v287 = vunpack.c.h.b16 %v81
    %v288 = vunpack.c.l.b16 %v82
    %v289 = vunpack.c.h.b16 %v82
    %v290 = vunpack.c.l.b16 %v83
    %v291 = vunpack.c.h.b16 %v83
    %v292 = vunpack.c.l.b16 %v84
    %v293 = vunpack.c.h.b16 %v84
    %v294 = vunpack.c.l.b16 %v85
    %v295 = vunpack.c.h.b16 %v85
    %v296 = vunpack.c.l.b16 %v86
    %v297 = vunpack.c.h.b16 %v86
    %v298 = vunpack.c.l.b16 %v87
    %v299 = vunpack.c.h.b16 %v87
    %v300 = vunpack.c.l.b16 %v88
    %v301 = vunpack.c.h.b16 %v88
    %v302 = vunpack.c.l.b16 %v89
    %v303 = vunpack.c.h.b16 %v89
    %v304 = vunpack.c.l.b16 %v90
    %v305 = vunpack.c.h.b16 %v90
    %v306 = vunpack.c.l.b16 %v91
    %v307 = vunpack.c.h.b16 %v91
    %v308 = vunpack.c.l.b16 %v92
    %v309 = vunpack.c.h.b16 %v92
    %v310 = vunpack.c.l.b16 %v93
    %v311 = vunpack.c.h.b16 %v93
    %v312 = vunpack.c.l.b16 %v94
    %v313 = vunpack.c.h.b16 %v94
    %v314 = vunpack.c.l.b16 %v95
    %v315 = vunpack.c.h.b16 %v95
    %v316 = vunpack.c.l.b16 %v96
    %v317 = vunpack.c.h.b16 %v96
    %v318 = vunpack.c.l.b16 %v97
    %v319 = vunpack.c.h.b16 %v97
    %v320 = vunpack.c.l.b16 %v98
    %v321 = vunpack.c.h.b16 %v98
    %v322 = vunpack.c.l.b16 %v99
    %v323 = vunpack.c.h.b16 %v99
    %v324 = vunpack.c.l.b16 %v100
    %v325 = vunpack.c.h.b16 %v100
    %v326 = vunpack.c.l.b16 %v101
    %v327 = vunpack.c.h.b16 %v101
    %v328 = vunpack.c.l.b16 %v102
    %v329 = vunpack.c.h.b16 %v102
    %v330 = vunpack.c.l.b16 %v103
    %v331 = vunpack.c.h.b16 %v103
    %v332 = vunpack.c.l.b16 %v104
    %v333 = vunpack.c.h.b16 %v104
    %v334 = vunpack.c.l.b16 %v105
    %v335 = vunpack.c.h.b16 %v105
    %v336 = vunpack.c.l.b16 %v106
    %v337 = vunpack.c.h.b16 %v106
    %v338 = vunpack.c.l.b16 %v107
    %v339 = vunpack.c.h.b16 %v107
    %v340 = vunpack.c.l.b16 %v108
    %v341 = vunpack.c.h.b16 %v108
    %v342 = vunpack.c.l.b16 %v109
    %v343 = vunpack.c.h.b16 %v109
    %v344 = vunpack.c.l.b16 %v110
    %v345 = vunpack.c.h.b16 %v110
    %v346 = vunpack.c.l.b16 %v111
    %v347 = vunpack.c.h.b16 %v111
    %v348 = vunpack.c.l.b16 %v112
    %v349 = vunpack.c.h.b16 %v112
    %v350 = vunpack.c.l.b16 %v113
    %v351 = vunpack.c.h.b16 %v113
    %v352 = vunpack.c.l.b16 %v114
    %v353 = vunpack.c.h.b16 %v114
    %v354 = vunpack.c.l.b16 %v115
    %v355 = vunpack.c.h.b16 %v115
    %v356 = vpack.c.b16 %v236, %v228
    %v357 = vpack.c.b16 %v237, %v229
    %v358 = vpack.c.b16 %v238, %v230
    %v359 = vpack.c.b16 %v239, %v231
    %v360 = vpack.c.b16 %v240, %v232
    %v361 = vpack.c.b16 %v241, %v233
    %v362 = vpack.c.b16 %v242, %v234
    %v363 = vpack.c.b16 %v243, %v235
    %v364 = vpack.c.b16 %v252, %v244
    %v365 = vpack.c.b16 %v253, %v245
    %v366 = vpack.c.b16 %v254, %v246
    %v367 = vpack.c.b16 %v255, %v247
    %v368 = vpack.c.b16 %v256, %v248
    %v369 = vpack.c.b16 %v257, %v249
    %v370 = vpack.c.b16 %v258, %v250
    %v371 = vpack.c.b16 %v259, %v251
    %v372 = vpack.c.b16 %v268, %v260
    %v373 = vpack.c.b16 %v269, %v261
    %v374 = vpack.c.b16 %v270, %v262
    %v375 = vpack.c.b16 %v271, %v263
    %v376 = vpack.c.b16 %v272, %v264
    %v377 = vpack.c.b16 %v273, %v265
    %v378 = vpack.c.b16 %v274, %v266
    %v379 = vpack.c.b16 %v275, %v267
    %v380 = vpack.c.b16 %v284, %v276
    %v381 = vpack.c.b16 %v285, %v277
    %v382 = vpack.c.b16 %v286, %v278
    %v383 = vpack.c.b16 %v287, %v279
    %v384 = vpack.c.b16 %v288, %v280
    %v385 = vpack.c.b16 %v289, %v281
    %v386 = vpack.c.b16 %v290, %v282
    %v387 = vpack.c.b16 %v291, %v283
    %v388 = vpack.c.b16 %v300, %v292
    %v389 = vpack.c.b16 %v301, %v293
    %v390 = vpack.c.b16 %v302, %v294
    %v391 = vpack.c.b16 %v303, %v295
    %v392 = vpack.c.b16 %v304, %v296
    %v393 = vpack.c.b16 %v305, %v297
    %v394 = vpack.c.b16 %v306, %v298
    %v395 = vpack.c.b16 %v307, %v299
    %v396 = vpack.c.b16 %v316, %v308
    %v397 = vpack.c.b16 %v317, %v309
    %v398 = vpack.c.b16 %v318, %v310
    %v399 = vpack.c.b16 %v319, %v311
    %v400 = vpack.c.b16 %v320, %v312
    %v401 = vpack.c.b16 %v321, %v313
    %v402 = vpack.c.b16 %v322, %v314
    %v403 = vpack.c.b16 %v323, %v315
    %v404 = vpack.c.b16 %v332, %v324
    %v405 = vpack.c.b16 %v333, %v325
    %v406 = vpack.c.b16 %v334, %v326
    %v407 = vpack.c.b16 %v335, %v327
    %v408 = vpack.c.b16 %v336, %v328
    %v409 = vpack.c.b16 %v337, %v329
    %v410 = vpack.c.b16 %v338, %v330
    %v411 = vpack.c.b16 %v339, %v331
    %v412 = vpack.c.b16 %v348, %v340
    %v413 = vpack.c.b16 %v349, %v341
    %v414 = vpack.c.b16 %v350, %v342
    %v415 = vpack.c.b16 %v351, %v343
    %v416 = vpack.c.b16 %v352, %v344
    %v417 = vpack.c.b16 %v353, %v345
    %v418 = vpack.c.b16 %v354, %v346
    %v419 = vpack.c.b16 %v355, %v347
    %484 = vmatprep.subr.bf16.mxu0 %v357
    %485 = vmatpush1.bf16.msra.mxu0 %v356
    %486 = vmatprep.subr.bf16.mxu0 %v365
    %487 = vmatpush1.bf16.msra.mxu0 %v364
    %488 = vmatprep.subr.bf16.mxu0 %v373
    %489 = vmatpush1.bf16.msra.mxu0 %v372
    %490 = vmatprep.subr.bf16.mxu0 %v381
    %491 = vmatpush1.bf16.msra.mxu0 %v380
    %492 = vmatprep.subr.bf16.mxu0 %v389
    %493 = vmatpush1.bf16.msra.mxu0 %v388
    %494 = vmatprep.subr.bf16.mxu0 %v397
    %495 = vmatpush1.bf16.msra.mxu0 %v396
    %496 = vmatprep.subr.bf16.mxu0 %v405
    %497 = vmatpush1.bf16.msra.mxu0 %v404
    %498 = vmatprep.subr.bf16.mxu0 %v413
    %499 = vmatpush1.bf16.msra.mxu0 %v412
    %500 = vmatprep.subr.bf16.mxu0 0
    %501 = vmatpush1.bf16.msra.mxu0 0
    %502 = vmatprep.subr.bf16.mxu0 0
    %503 = vmatpush1.bf16.msra.mxu0 0
    %504 = vmatprep.subr.bf16.mxu0 0
    %505 = vmatpush1.bf16.msra.mxu0 0
    %506 = vmatprep.subr.bf16.mxu0 0
    %507 = vmatpush1.bf16.msra.mxu0 0
    %508 = vmatprep.subr.bf16.mxu0 0
    %509 = vmatpush1.bf16.msra.mxu0 0
    %510 = vmatprep.subr.bf16.mxu0 0
    %511 = vmatpush1.bf16.msra.mxu0 0
    %512 = vmatprep.subr.bf16.mxu0 0
    %513 = vmatpush1.bf16.msra.mxu0 0
    %514 = vmatprep.subr.bf16.mxu0 0
    %515 = vmatpush1.bf16.msra.mxu0 0
    %516 = vmatprep.mubr.bf16.mxu0 0
    %517 = vmatmul.mubr.bf16.gmra.mrb[0].mxu0 %v148
    %v518 = vpop.f32.mrb[0].mxu0
    %v519 = vadd.f32 0.0, %v518
    %v520 = vpop.f32.mrb[0].mxu0
    %v521 = vadd.f32 0.0, %v520
    %v522 = vpop.f32.mrb[0].mxu0
    %v523 = vadd.f32 0.0, %v522
    %v524 = vpop.f32.mrb[0].mxu0
    %v525 = vadd.f32 0.0, %v524
    %526 = vmatprep.mubr.bf16.mxu0 0
    %527 = vmatmul.mubr.bf16.gmra.mrb[0].mxu0 %v149
    %v528 = vpop.f32.mrb[0].mxu0
    %v529 = vadd.f32 0.0, %v528
    %v530 = vpop.f32.mrb[0].mxu0
    %v531 = vadd.f32 0.0, %v530
    %v532 = vpop.f32.mrb[0].mxu0
    %v533 = vadd.f32 0.0, %v532
    %v534 = vpop.f32.mrb[0].mxu0
    %v535 = vadd.f32 0.0, %v534
    %536 = vmatprep.mubr.bf16.mxu0 0
    %537 = vmatmul.mubr.bf16.gmra.mrb[0].mxu0 %v150
    %v538 = vpop.f32.mrb[0].mxu0
    %v539 = vadd.f32 0.0, %v538
    %v540 = vpop.f32.mrb[0].mxu0
    %v541 = vadd.f32 0.0, %v540
    %v542 = vpop.f32.mrb[0].mxu0
    %v543 = vadd.f32 0.0, %v542
    %v544 = vpop.f32.mrb[0].mxu0
    %v545 = vadd.f32 0.0, %v544
    %546 = vmatprep.mubr.bf16.mxu0 0
    %547 = vmatmul.mubr.bf16.gmra.mrb[0].mxu0 %v151
    %v548 = vpop.f32.mrb[0].mxu0
    %v549 = vadd.f32 0.0, %v548
    %v550 = vpop.f32.mrb[0].mxu0
    %v551 = vadd.f32 0.0, %v550
    %v552 = vpop.f32.mrb[0].mxu0
    %v553 = vadd.f32 0.0, %v552
    %v554 = vpop.f32.mrb[0].mxu0
    %v555 = vadd.f32 0.0, %v554
    %556 = vmatprep.mubr.bf16.mxu0 0
    %557 = vmatmul.mubr.bf16.gmra.mrb[0].mxu0 %v152
    %v558 = vpop.f32.mrb[0].mxu0
    %v559 = vadd.f32 0.0, %v558
    %v560 = vpop.f32.mrb[0].mxu0
    %v561 = vadd.f32 0.0, %v560
    %v562 = vpop.f32.mrb[0].mxu0
    %v563 = vadd.f32 0.0, %v562
    %v564 = vpop.f32.mrb[0].mxu0
    %v565 = vadd.f32 0.0, %v564
    %566 = vmatprep.mubr.bf16.mxu0 0
    %567 = vmatmul.mubr.bf16.gmra.mrb[0].mxu0 %v153
    %v568 = vpop.f32.mrb[0].mxu0
    %v569 = vadd.f32 0.0, %v568
    %v570 = vpop.f32.mrb[0].mxu0
    %v571 = vadd.f32 0.0, %v570
    %v572 = vpop.f32.mrb[0].mxu0
    %v573 = vadd.f32 0.0, %v572
    %v574 = vpop.f32.mrb[0].mxu0
    %v575 = vadd.f32 0.0, %v574
    %576 = vmatprep.mubr.bf16.mxu0 0
    %577 = vmatmul.mubr.bf16.gmra.mrb[0].mxu0 %v154
    %v578 = vpop.f32.mrb[0].mxu0
    %v579 = vadd.f32 0.0, %v578
    %v580 = vpop.f32.mrb[0].mxu0
    %v581 = vadd.f32 0.0, %v580
    %v582 = vpop.f32.mrb[0].mxu0
    %v583 = vadd.f32 0.0, %v582
    %v584 = vpop.f32.mrb[0].mxu0
    %v585 = vadd.f32 0.0, %v584
    %586 = vmatprep.mubr.bf16.mxu0 0
    %587 = vmatmul.mubr.bf16.gmra.mrb[0].mxu0 %v155
    %v588 = vpop.f32.mrb[0].mxu0
    %v589 = vadd.f32 0.0, %v588
    %v590 = vpop.f32.mrb[0].mxu0
    %v591 = vadd.f32 0.0, %v590
    %v592 = vpop.f32.mrb[0].mxu0
    %v593 = vadd.f32 0.0, %v592
    %v594 = vpop.f32.mrb[0].mxu0
    %v595 = vadd.f32 0.0, %v594
    %596 = vdwg.mxu0
    %597 = vmatprep.subr.bf16.mxu0 %v359
    %598 = vmatpush1.bf16.msra.mxu0 %v358
    %599 = vmatprep.subr.bf16.mxu0 %v367
    %600 = vmatpush1.bf16.msra.mxu0 %v366
    %601 = vmatprep.subr.bf16.mxu0 %v375
    %602 = vmatpush1.bf16.msra.mxu0 %v374
    %603 = vmatprep.subr.bf16.mxu0 %v383
    %604 = vmatpush1.bf16.msra.mxu0 %v382
    %605 = vmatprep.subr.bf16.mxu0 %v391
    %606 = vmatpush1.bf16.msra.mxu0 %v390
    %607 = vmatprep.subr.bf16.mxu0 %v399
    %608 = vmatpush1.bf16.msra.mxu0 %v398
    %609 = vmatprep.subr.bf16.mxu0 %v407
    %610 = vmatpush1.bf16.msra.mxu0 %v406
    %611 = vmatprep.subr.bf16.mxu0 %v415
    %612 = vmatpush1.bf16.msra.mxu0 %v414
    %613 = vmatprep.subr.bf16.mxu0 0
    %614 = vmatpush1.bf16.msra.mxu0 0
    %615 = vmatprep.subr.bf16.mxu0 0
    %616 = vmatpush1.bf16.msra.mxu0 0
    %617 = vmatprep.subr.bf16.mxu0 0
    %618 = vmatpush1.bf16.msra.mxu0 0
    %619 = vmatprep.subr.bf16.mxu0 0
    %620 = vmatpush1.bf16.msra.mxu0 0
    %621 = vmatprep.subr.bf16.mxu0 0
    %622 = vmatpush1.bf16.msra.mxu0 0
    %623 = vmatprep.subr.bf16.mxu0 0
    %624 = vmatpush1.bf16.msra.mxu0 0
    %625 = vmatprep.subr.bf16.mxu0 0
    %626 = vmatpush1.bf16.msra.mxu0 0
    %627 = vmatprep.subr.bf16.mxu0 0
    %628 = vmatpush1.bf16.msra.mxu0 0
    %629 = vmatprep.mubr.bf16.mxu0 0
    %630 = vmatmul.mubr.bf16.gmra.mrb[0].mxu0 %v148
    %v631 = vpop.f32.mrb[0].mxu0
    %v632 = vadd.f32 0.0, %v631
    %v633 = vpop.f32.mrb[0].mxu0
    %v634 = vadd.f32 0.0, %v633
    %v635 = vpop.f32.mrb[0].mxu0
    %v636 = vadd.f32 0.0, %v635
    %v637 = vpop.f32.mrb[0].mxu0
    %v638 = vadd.f32 0.0, %v637
    %639 = vmatprep.mubr.bf16.mxu0 0
    %640 = vmatmul.mubr.bf16.gmra.mrb[0].mxu0 %v149
    %v641 = vpop.f32.mrb[0].mxu0
    %v642 = vadd.f32 0.0, %v641
    %v643 = vpop.f32.mrb[0].mxu0
    %v644 = vadd.f32 0.0, %v643
    %v645 = vpop.f32.mrb[0].mxu0
    %v646 = vadd.f32 0.0, %v645
    %v647 = vpop.f32.mrb[0].mxu0
    %v648 = vadd.f32 0.0, %v647
    %649 = vmatprep.mubr.bf16.mxu0 0
    %650 = vmatmul.mubr.bf16.gmra.mrb[0].mxu0 %v150
    %v651 = vpop.f32.mrb[0].mxu0
    %v652 = vadd.f32 0.0, %v651
    %v653 = vpop.f32.mrb[0].mxu0
    %v654 = vadd.f32 0.0, %v653
    %v655 = vpop.f32.mrb[0].mxu0
    %v656 = vadd.f32 0.0, %v655
    %v657 = vpop.f32.mrb[0].mxu0
    %v658 = vadd.f32 0.0, %v657
    %659 = vmatprep.mubr.bf16.mxu0 0
    %660 = vmatmul.mubr.bf16.gmra.mrb[0].mxu0 %v151
    %v661 = vpop.f32.mrb[0].mxu0
    %v662 = vadd.f32 0.0, %v661
    %v663 = vpop.f32.mrb[0].mxu0
    %v664 = vadd.f32 0.0, %v663
    %v665 = vpop.f32.mrb[0].mxu0
    %v666 = vadd.f32 0.0, %v665
    %v667 = vpop.f32.mrb[0].mxu0
    %v668 = vadd.f32 0.0, %v667
    %669 = vmatprep.mubr.bf16.mxu0 0
    %670 = vmatmul.mubr.bf16.gmra.mrb[0].mxu0 %v152
    %v671 = vpop.f32.mrb[0].mxu0
    %v672 = vadd.f32 0.0, %v671
    %v673 = vpop.f32.mrb[0].mxu0
    %v674 = vadd.f32 0.0, %v673
    %v675 = vpop.f32.mrb[0].mxu0
    %v676 = vadd.f32 0.0, %v675
    %v677 = vpop.f32.mrb[0].mxu0
    %v678 = vadd.f32 0.0, %v677
    %679 = vmatprep.mubr.bf16.mxu0 0
    %680 = vmatmul.mubr.bf16.gmra.mrb[0].mxu0 %v153
    %v681 = vpop.f32.mrb[0].mxu0
    %v682 = vadd.f32 0.0, %v681
    %v683 = vpop.f32.mrb[0].mxu0
    %v684 = vadd.f32 0.0, %v683
    %v685 = vpop.f32.mrb[0].mxu0
    %v686 = vadd.f32 0.0, %v685
    %v687 = vpop.f32.mrb[0].mxu0
    %v688 = vadd.f32 0.0, %v687
    %689 = vmatprep.mubr.bf16.mxu0 0
    %690 = vmatmul.mubr.bf16.gmra.mrb[0].mxu0 %v154
    %v691 = vpop.f32.mrb[0].mxu0
    %v692 = vadd.f32 0.0, %v691
    %v693 = vpop.f32.mrb[0].mxu0
    %v694 = vadd.f32 0.0, %v693
    %v695 = vpop.f32.mrb[0].mxu0
    %v696 = vadd.f32 0.0, %v695
    %v697 = vpop.f32.mrb[0].mxu0
    %v698 = vadd.f32 0.0, %v697
    %699 = vmatprep.mubr.bf16.mxu0 0
    %700 = vmatmul.mubr.bf16.gmra.mrb[0].mxu0 %v155
    %v701 = vpop.f32.mrb[0].mxu0
    %v702 = vadd.f32 0.0, %v701
    %v703 = vpop.f32.mrb[0].mxu0
    %v704 = vadd.f32 0.0, %v703
    %v705 = vpop.f32.mrb[0].mxu0
    %v706 = vadd.f32 0.0, %v705
    %v707 = vpop.f32.mrb[0].mxu0
    %v708 = vadd.f32 0.0, %v707
    %709 = vdwg.mxu0
    %710 = vmatprep.subr.bf16.mxu0 %v361
    %711 = vmatpush1.bf16.msra.mxu0 %v360
    %712 = vmatprep.subr.bf16.mxu0 %v369
    %713 = vmatpush1.bf16.msra.mxu0 %v368
    %714 = vmatprep.subr.bf16.mxu0 %v377
    %715 = vmatpush1.bf16.msra.mxu0 %v376
    %716 = vmatprep.subr.bf16.mxu0 %v385
    %717 = vmatpush1.bf16.msra.mxu0 %v384
    %718 = vmatprep.subr.bf16.mxu0 %v393
    %719 = vmatpush1.bf16.msra.mxu0 %v392
    %720 = vmatprep.subr.bf16.mxu0 %v401
    %721 = vmatpush1.bf16.msra.mxu0 %v400
    %722 = vmatprep.subr.bf16.mxu0 %v409
    %723 = vmatpush1.bf16.msra.mxu0 %v408
    %724 = vmatprep.subr.bf16.mxu0 %v417
    %725 = vmatpush1.bf16.msra.mxu0 %v416
    %726 = vmatprep.subr.bf16.mxu0 0
    %727 = vmatpush1.bf16.msra.mxu0 0
    %728 = vmatprep.subr.bf16.mxu0 0
    %729 = vmatpush1.bf16.msra.mxu0 0
    %730 = vmatprep.subr.bf16.mxu0 0
    %731 = vmatpush1.bf16.msra.mxu0 0
    %732 = vmatprep.subr.bf16.mxu0 0
    %733 = vmatpush1.bf16.msra.mxu0 0
    %734 = vmatprep.subr.bf16.mxu0 0
    %735 = vmatpush1.bf16.msra.mxu0 0
    %736 = vmatprep.subr.bf16.mxu0 0
    %737 = vmatpush1.bf16.msra.mxu0 0
    %738 = vmatprep.subr.bf16.mxu0 0
    %739 = vmatpush1.bf16.msra.mxu0 0
    %740 = vmatprep.subr.bf16.mxu0 0
    %741 = vmatpush1.bf16.msra.mxu0 0
    %742 = vmatprep.mubr.bf16.mxu0 0
    %743 = vmatmul.mubr.bf16.gmra.mrb[0].mxu0 %v148
    %v744 = vpop.f32.mrb[0].mxu0
    %v745 = vadd.f32 0.0, %v744
    %v746 = vpop.f32.mrb[0].mxu0
    %v747 = vadd.f32 0.0, %v746
    %v748 = vpop.f32.mrb[0].mxu0
    %v749 = vadd.f32 0.0, %v748
    %v750 = vpop.f32.mrb[0].mxu0
    %v751 = vadd.f32 0.0, %v750
    %752 = vmatprep.mubr.bf16.mxu0 0
    %753 = vmatmul.mubr.bf16.gmra.mrb[0].mxu0 %v149
    %v754 = vpop.f32.mrb[0].mxu0
    %v755 = vadd.f32 0.0, %v754
    %v756 = vpop.f32.mrb[0].mxu0
    %v757 = vadd.f32 0.0, %v756
    %v758 = vpop.f32.mrb[0].mxu0
    %v759 = vadd.f32 0.0, %v758
    %v760 = vpop.f32.mrb[0].mxu0
    %v761 = vadd.f32 0.0, %v760
    %762 = vmatprep.mubr.bf16.mxu0 0
    %763 = vmatmul.mubr.bf16.gmra.mrb[0].mxu0 %v150
    %v764 = vpop.f32.mrb[0].mxu0
    %v765 = vadd.f32 0.0, %v764
    %v766 = vpop.f32.mrb[0].mxu0
    %v767 = vadd.f32 0.0, %v766
    %v768 = vpop.f32.mrb[0].mxu0
    %v769 = vadd.f32 0.0, %v768
    %v770 = vpop.f32.mrb[0].mxu0
    %v771 = vadd.f32 0.0, %v770
    %772 = vmatprep.mubr.bf16.mxu0 0
    %773 = vmatmul.mubr.bf16.gmra.mrb[0].mxu0 %v151
    %v774 = vpop.f32.mrb[0].mxu0
    %v775 = vadd.f32 0.0, %v774
    %v776 = vpop.f32.mrb[0].mxu0
    %v777 = vadd.f32 0.0, %v776
    %v778 = vpop.f32.mrb[0].mxu0
    %v779 = vadd.f32 0.0, %v778
    %v780 = vpop.f32.mrb[0].mxu0
    %v781 = vadd.f32 0.0, %v780
    %782 = vmatprep.mubr.bf16.mxu0 0
    %783 = vmatmul.mubr.bf16.gmra.mrb[0].mxu0 %v152
    %v784 = vpop.f32.mrb[0].mxu0
    %v785 = vadd.f32 0.0, %v784
    %v786 = vpop.f32.mrb[0].mxu0
    %v787 = vadd.f32 0.0, %v786
    %v788 = vpop.f32.mrb[0].mxu0
    %v789 = vadd.f32 0.0, %v788
    %v790 = vpop.f32.mrb[0].mxu0
    %v791 = vadd.f32 0.0, %v790
    %792 = vmatprep.mubr.bf16.mxu0 0
    %793 = vmatmul.mubr.bf16.gmra.mrb[0].mxu0 %v153
    %v794 = vpop.f32.mrb[0].mxu0
    %v795 = vadd.f32 0.0, %v794
    %v796 = vpop.f32.mrb[0].mxu0
    %v797 = vadd.f32 0.0, %v796
    %v798 = vpop.f32.mrb[0].mxu0
    %v799 = vadd.f32 0.0, %v798
    %v800 = vpop.f32.mrb[0].mxu0
    %v801 = vadd.f32 0.0, %v800
    %802 = vmatprep.mubr.bf16.mxu0 0
    %803 = vmatmul.mubr.bf16.gmra.mrb[0].mxu0 %v154
    %v804 = vpop.f32.mrb[0].mxu0
    %v805 = vadd.f32 0.0, %v804
    %v806 = vpop.f32.mrb[0].mxu0
    %v807 = vadd.f32 0.0, %v806
    %v808 = vpop.f32.mrb[0].mxu0
    %v809 = vadd.f32 0.0, %v808
    %v810 = vpop.f32.mrb[0].mxu0
    %v811 = vadd.f32 0.0, %v810
    %812 = vmatprep.mubr.bf16.mxu0 0
    %813 = vmatmul.mubr.bf16.gmra.mrb[0].mxu0 %v155
    %v814 = vpop.f32.mrb[0].mxu0
    %v815 = vadd.f32 0.0, %v814
    %v816 = vpop.f32.mrb[0].mxu0
    %v817 = vadd.f32 0.0, %v816
    %v818 = vpop.f32.mrb[0].mxu0
    %v819 = vadd.f32 0.0, %v818
    %v820 = vpop.f32.mrb[0].mxu0
    %v821 = vadd.f32 0.0, %v820
    %822 = vdwg.mxu0
    %823 = vmatprep.subr.bf16.mxu0 %v363
    %824 = vmatpush1.bf16.msra.mxu0 %v362
    %825 = vmatprep.subr.bf16.mxu0 %v371
    %826 = vmatpush1.bf16.msra.mxu0 %v370
    %827 = vmatprep.subr.bf16.mxu0 %v379
    %828 = vmatpush1.bf16.msra.mxu0 %v378
    %829 = vmatprep.subr.bf16.mxu0 %v387
    %830 = vmatpush1.bf16.msra.mxu0 %v386
    %831 = vmatprep.subr.bf16.mxu0 %v395
    %832 = vmatpush1.bf16.msra.mxu0 %v394
    %833 = vmatprep.subr.bf16.mxu0 %v403
    %834 = vmatpush1.bf16.msra.mxu0 %v402
    %835 = vmatprep.subr.bf16.mxu0 %v411
    %836 = vmatpush1.bf16.msra.mxu0 %v410
    %837 = vmatprep.subr.bf16.mxu0 %v419
    %838 = vmatpush1.bf16.msra.mxu0 %v418
    %839 = vmatprep.subr.bf16.mxu0 0
    %840 = vmatpush1.bf16.msra.mxu0 0
    %841 = vmatprep.subr.bf16.mxu0 0
    %842 = vmatpush1.bf16.msra.mxu0 0
    %843 = vmatprep.subr.bf16.mxu0 0
    %844 = vmatpush1.bf16.msra.mxu0 0
    %845 = vmatprep.subr.bf16.mxu0 0
    %846 = vmatpush1.bf16.msra.mxu0 0
    %847 = vmatprep.subr.bf16.mxu0 0
    %848 = vmatpush1.bf16.msra.mxu0 0
    %849 = vmatprep.subr.bf16.mxu0 0
    %850 = vmatpush1.bf16.msra.mxu0 0
    %851 = vmatprep.subr.bf16.mxu0 0
    %852 = vmatpush1.bf16.msra.mxu0 0
    %853 = vmatprep.subr.bf16.mxu0 0
    %854 = vmatpush1.bf16.msra.mxu0 0
    %855 = vmatprep.mubr.bf16.mxu0 0
    %856 = vmatmul.mubr.bf16.gmra.mrb[0].mxu0 %v148
    %v857 = vpop.f32.mrb[0].mxu0
    %v858 = vadd.f32 0.0, %v857
    %v859 = vpop.f32.mrb[0].mxu0
    %v860 = vadd.f32 0.0, %v859
    %v861 = vpop.f32.mrb[0].mxu0
    %v862 = vadd.f32 0.0, %v861
    %v863 = vpop.f32.mrb[0].mxu0
    %v864 = vadd.f32 0.0, %v863
    %865 = vmatprep.mubr.bf16.mxu0 0
    %866 = vmatmul.mubr.bf16.gmra.mrb[0].mxu0 %v149
    %v867 = vpop.f32.mrb[0].mxu0
    %v868 = vadd.f32 0.0, %v867
    %v869 = vpop.f32.mrb[0].mxu0
    %v870 = vadd.f32 0.0, %v869
    %v871 = vpop.f32.mrb[0].mxu0
    %v872 = vadd.f32 0.0, %v871
    %v873 = vpop.f32.mrb[0].mxu0
    %v874 = vadd.f32 0.0, %v873
    %875 = vmatprep.mubr.bf16.mxu0 0
    %876 = vmatmul.mubr.bf16.gmra.mrb[0].mxu0 %v150
    %v877 = vpop.f32.mrb[0].mxu0
    %v878 = vadd.f32 0.0, %v877
    %v879 = vpop.f32.mrb[0].mxu0
    %v880 = vadd.f32 0.0, %v879
    %v881 = vpop.f32.mrb[0].mxu0
    %v882 = vadd.f32 0.0, %v881
    %v883 = vpop.f32.mrb[0].mxu0
    %v884 = vadd.f32 0.0, %v883
    %885 = vmatprep.mubr.bf16.mxu0 0
    %886 = vmatmul.mubr.bf16.gmra.mrb[0].mxu0 %v151
    %v887 = vpop.f32.mrb[0].mxu0
    %v888 = vadd.f32 0.0, %v887
    %v889 = vpop.f32.mrb[0].mxu0
    %v890 = vadd.f32 0.0, %v889
    %v891 = vpop.f32.mrb[0].mxu0
    %v892 = vadd.f32 0.0, %v891
    %v893 = vpop.f32.mrb[0].mxu0
    %v894 = vadd.f32 0.0, %v893
    %895 = vmatprep.mubr.bf16.mxu0 0
    %896 = vmatmul.mubr.bf16.gmra.mrb[0].mxu0 %v152
    %v897 = vpop.f32.mrb[0].mxu0
    %v898 = vadd.f32 0.0, %v897
    %v899 = vpop.f32.mrb[0].mxu0
    %v900 = vadd.f32 0.0, %v899
    %v901 = vpop.f32.mrb[0].mxu0
    %v902 = vadd.f32 0.0, %v901
    %v903 = vpop.f32.mrb[0].mxu0
    %v904 = vadd.f32 0.0, %v903
    %905 = vmatprep.mubr.bf16.mxu0 0
    %906 = vmatmul.mubr.bf16.gmra.mrb[0].mxu0 %v153
    %v907 = vpop.f32.mrb[0].mxu0
    %v908 = vadd.f32 0.0, %v907
    %v909 = vpop.f32.mrb[0].mxu0
    %v910 = vadd.f32 0.0, %v909
    %v911 = vpop.f32.mrb[0].mxu0
    %v912 = vadd.f32 0.0, %v911
    %v913 = vpop.f32.mrb[0].mxu0
    %v914 = vadd.f32 0.0, %v913
    %915 = vmatprep.mubr.bf16.mxu0 0
    %916 = vmatmul.mubr.bf16.gmra.mrb[0].mxu0 %v154
    %v917 = vpop.f32.mrb[0].mxu0
    %v918 = vadd.f32 0.0, %v917
    %v919 = vpop.f32.mrb[0].mxu0
    %v920 = vadd.f32 0.0, %v919
    %v921 = vpop.f32.mrb[0].mxu0
    %v922 = vadd.f32 0.0, %v921
    %v923 = vpop.f32.mrb[0].mxu0
    %v924 = vadd.f32 0.0, %v923
    %925 = vmatprep.mubr.bf16.mxu0 0
    %926 = vmatmul.mubr.bf16.gmra.mrb[0].mxu0 %v155
    %v927 = vpop.f32.mrb[0].mxu0
    %v928 = vadd.f32 0.0, %v927
    %v929 = vpop.f32.mrb[0].mxu0
    %v930 = vadd.f32 0.0, %v929
    %v931 = vpop.f32.mrb[0].mxu0
    %v932 = vadd.f32 0.0, %v931
    %v933 = vpop.f32.mrb[0].mxu0
    %v934 = vadd.f32 0.0, %v933
    %935 = vdwg.mxu0
    %v936 = vxor.u32 %v519, 2147483648
    %v937 = vxor.u32 %v521, 2147483648
    %v938 = vxor.u32 %v632, 2147483648
    %v939 = vxor.u32 %v634, 2147483648
    %v940 = vxor.u32 %v523, 2147483648
    %v941 = vxor.u32 %v525, 2147483648
    %v942 = vxor.u32 %v636, 2147483648
    %v943 = vxor.u32 %v638, 2147483648
    %v944 = vxor.u32 %v529, 2147483648
    %v945 = vxor.u32 %v531, 2147483648
    %v946 = vxor.u32 %v642, 2147483648
    %v947 = vxor.u32 %v644, 2147483648
    %v948 = vxor.u32 %v533, 2147483648
    %v949 = vxor.u32 %v535, 2147483648
    %v950 = vxor.u32 %v646, 2147483648
    %v951 = vxor.u32 %v648, 2147483648
    %v952 = vxor.u32 %v539, 2147483648
    %v953 = vxor.u32 %v541, 2147483648
    %v954 = vxor.u32 %v652, 2147483648
    %v955 = vxor.u32 %v654, 2147483648
    %v956 = vxor.u32 %v543, 2147483648
    %v957 = vxor.u32 %v545, 2147483648
    %v958 = vxor.u32 %v656, 2147483648
    %v959 = vxor.u32 %v658, 2147483648
    %v960 = vxor.u32 %v549, 2147483648
    %v961 = vxor.u32 %v551, 2147483648
    %v962 = vxor.u32 %v662, 2147483648
    %v963 = vxor.u32 %v664, 2147483648
    %v964 = vxor.u32 %v553, 2147483648
    %v965 = vxor.u32 %v555, 2147483648
    %v966 = vxor.u32 %v666, 2147483648
    %v967 = vxor.u32 %v668, 2147483648
    %v968 = vxor.u32 %v559, 2147483648
    %v969 = vxor.u32 %v561, 2147483648
    %v970 = vxor.u32 %v672, 2147483648
    %v971 = vxor.u32 %v674, 2147483648
    %v972 = vxor.u32 %v563, 2147483648
    %v973 = vxor.u32 %v565, 2147483648
    %v974 = vxor.u32 %v676, 2147483648
    %v975 = vxor.u32 %v678, 2147483648
    %v976 = vxor.u32 %v569, 2147483648
    %v977 = vxor.u32 %v571, 2147483648
    %v978 = vxor.u32 %v682, 2147483648
    %v979 = vxor.u32 %v684, 2147483648
    %v980 = vxor.u32 %v573, 2147483648
    %v981 = vxor.u32 %v575, 2147483648
    %v982 = vxor.u32 %v686, 2147483648
    %v983 = vxor.u32 %v688, 2147483648
    %v984 = vxor.u32 %v579, 2147483648
    %v985 = vxor.u32 %v581, 2147483648
    %v986 = vxor.u32 %v692, 2147483648
    %v987 = vxor.u32 %v694, 2147483648
    %v988 = vxor.u32 %v583, 2147483648
    %v989 = vxor.u32 %v585, 2147483648
    %v990 = vxor.u32 %v696, 2147483648
    %v991 = vxor.u32 %v698, 2147483648
    %v992 = vxor.u32 %v589, 2147483648
    %v993 = vxor.u32 %v591, 2147483648
    %v994 = vxor.u32 %v702, 2147483648
    %v995 = vxor.u32 %v704, 2147483648
    %v996 = vxor.u32 %v593, 2147483648
    %v997 = vxor.u32 %v595, 2147483648
    %v998 = vxor.u32 %v706, 2147483648
    %v999 = vxor.u32 %v708, 2147483648
    %v1000 = vmul.f32 %v936, 1.442695
    %v1001 = vpow.pop %v1000
    %v1002 = vmul.f32 %v937, 1.442695
    %v1003 = vpow.pop %v1002
    %v1004 = vmul.f32 %v938, 1.442695
    %v1005 = vpow.pop %v1004
    %v1006 = vmul.f32 %v939, 1.442695
    %v1007 = vpow.pop %v1006
    %v1008 = vmul.f32 %v940, 1.442695
    %v1009 = vpow.pop %v1008
    %v1010 = vmul.f32 %v941, 1.442695
    %v1011 = vpow.pop %v1010
    %v1012 = vmul.f32 %v942, 1.442695
    %v1013 = vpow.pop %v1012
    %v1014 = vmul.f32 %v943, 1.442695
    %v1015 = vpow.pop %v1014
    %v1016 = vmul.f32 %v944, 1.442695
    %v1017 = vpow.pop %v1016
    %v1018 = vmul.f32 %v945, 1.442695
    %v1019 = vpow.pop %v1018
    %v1020 = vmul.f32 %v946, 1.442695
    %v1021 = vpow.pop %v1020
    %v1022 = vmul.f32 %v947, 1.442695
    %v1023 = vpow.pop %v1022
    %v1024 = vmul.f32 %v948, 1.442695
    %v1025 = vpow.pop %v1024
    %v1026 = vmul.f32 %v949, 1.442695
    %v1027 = vpow.pop %v1026
    %v1028 = vmul.f32 %v950, 1.442695
    %v1029 = vpow.pop %v1028
    %v1030 = vmul.f32 %v951, 1.442695
    %v1031 = vpow.pop %v1030
    %v1032 = vmul.f32 %v952, 1.442695
    %v1033 = vpow.pop %v1032
    %v1034 = vmul.f32 %v953, 1.442695
    %v1035 = vpow.pop %v1034
    %v1036 = vmul.f32 %v954, 1.442695
    %v1037 = vpow.pop %v1036
    %v1038 = vmul.f32 %v955, 1.442695
    %v1039 = vpow.pop %v1038
    %v1040 = vmul.f32 %v956, 1.442695
    %v1041 = vpow.pop %v1040
    %v1042 = vmul.f32 %v957, 1.442695
    %v1043 = vpow.pop %v1042
    %v1044 = vmul.f32 %v958, 1.442695
    %v1045 = vpow.pop %v1044
    %v1046 = vmul.f32 %v959, 1.442695
    %v1047 = vpow.pop %v1046
    %v1048 = vmul.f32 %v960, 1.442695
    %v1049 = vpow.pop %v1048
    %v1050 = vmul.f32 %v961, 1.442695
    %v1051 = vpow.pop %v1050
    %v1052 = vmul.f32 %v962, 1.442695
    %v1053 = vpow.pop %v1052
    %v1054 = vmul.f32 %v963, 1.442695
    %v1055 = vpow.pop %v1054
    %v1056 = vmul.f32 %v964, 1.442695
    %v1057 = vpow.pop %v1056
    %v1058 = vmul.f32 %v965, 1.442695
    %v1059 = vpow.pop %v1058
    %v1060 = vmul.f32 %v966, 1.442695
    %v1061 = vpow.pop %v1060
    %v1062 = vmul.f32 %v967, 1.442695
    %v1063 = vpow.pop %v1062
    %v1064 = vmul.f32 %v968, 1.442695
    %v1065 = vpow.pop %v1064
    %v1066 = vmul.f32 %v969, 1.442695
    %v1067 = vpow.pop %v1066
    %v1068 = vmul.f32 %v970, 1.442695
    %v1069 = vpow.pop %v1068
    %v1070 = vmul.f32 %v971, 1.442695
    %v1071 = vpow.pop %v1070
    %v1072 = vmul.f32 %v972, 1.442695
    %v1073 = vpow.pop %v1072
    %v1074 = vmul.f32 %v973, 1.442695
    %v1075 = vpow.pop %v1074
    %v1076 = vmul.f32 %v974, 1.442695
    %v1077 = vpow.pop %v1076
    %v1078 = vmul.f32 %v975, 1.442695
    %v1079 = vpow.pop %v1078
    %v1080 = vmul.f32 %v976, 1.442695
    %v1081 = vpow.pop %v1080
    %v1082 = vmul.f32 %v977, 1.442695
    %v1083 = vpow.pop %v1082
    %v1084 = vmul.f32 %v978, 1.442695
    %v1085 = vpow.pop %v1084
    %v1086 = vmul.f32 %v979, 1.442695
    %v1087 = vpow.pop %v1086
    %v1088 = vmul.f32 %v980, 1.442695
    %v1089 = vpow.pop %v1088
    %v1090 = vmul.f32 %v981, 1.442695
    %v1091 = vpow.pop %v1090
    %v1092 = vmul.f32 %v982, 1.442695
    %v1093 = vpow.pop %v1092
    %v1094 = vmul.f32 %v983, 1.442695
    %v1095 = vpow.pop %v1094
    %v1096 = vmul.f32 %v984, 1.442695
    %v1097 = vpow.pop %v1096
    %v1098 = vmul.f32 %v985, 1.442695
    %v1099 = vpow.pop %v1098
    %v1100 = vmul.f32 %v986, 1.442695
    %v1101 = vpow.pop %v1100
    %v1102 = vmul.f32 %v987, 1.442695
    %v1103 = vpow.pop %v1102
    %v1104 = vmul.f32 %v988, 1.442695
    %v1105 = vpow.pop %v1104
    %v1106 = vmul.f32 %v989, 1.442695
    %v1107 = vpow.pop %v1106
    %v1108 = vmul.f32 %v990, 1.442695
    %v1109 = vpow.pop %v1108
    %v1110 = vmul.f32 %v991, 1.442695
    %v1111 = vpow.pop %v1110
    %v1112 = vmul.f32 %v992, 1.442695
    %v1113 = vpow.pop %v1112
    %v1114 = vmul.f32 %v993, 1.442695
    %v1115 = vpow.pop %v1114
    %v1116 = vmul.f32 %v994, 1.442695
    %v1117 = vpow.pop %v1116
    %v1118 = vmul.f32 %v995, 1.442695
    %v1119 = vpow.pop %v1118
    %v1120 = vmul.f32 %v996, 1.442695
    %v1121 = vpow.pop %v1120
    %v1122 = vmul.f32 %v997, 1.442695
    %v1123 = vpow.pop %v1122
    %v1124 = vmul.f32 %v998, 1.442695
    %v1125 = vpow.pop %v1124
    %v1126 = vmul.f32 %v999, 1.442695
    %v1127 = vpow.pop %v1126
    %v1128 = vadd.f32 %v1001, 1.0
    %v1129 = vadd.f32 %v1003, 1.0
    %v1130 = vadd.f32 %v1005, 1.0
    %v1131 = vadd.f32 %v1007, 1.0
    %v1132 = vadd.f32 %v1009, 1.0
    %v1133 = vadd.f32 %v1011, 1.0
    %v1134 = vadd.f32 %v1013, 1.0
    %v1135 = vadd.f32 %v1015, 1.0
    %v1136 = vadd.f32 %v1017, 1.0
    %v1137 = vadd.f32 %v1019, 1.0
    %v1138 = vadd.f32 %v1021, 1.0
    %v1139 = vadd.f32 %v1023, 1.0
    %v1140 = vadd.f32 %v1025, 1.0
    %v1141 = vadd.f32 %v1027, 1.0
    %v1142 = vadd.f32 %v1029, 1.0
    %v1143 = vadd.f32 %v1031, 1.0
    %v1144 = vadd.f32 %v1033, 1.0
    %v1145 = vadd.f32 %v1035, 1.0
    %v1146 = vadd.f32 %v1037, 1.0
    %v1147 = vadd.f32 %v1039, 1.0
    %v1148 = vadd.f32 %v1041, 1.0
    %v1149 = vadd.f32 %v1043, 1.0
    %v1150 = vadd.f32 %v1045, 1.0
    %v1151 = vadd.f32 %v1047, 1.0
    %v1152 = vadd.f32 %v1049, 1.0
    %v1153 = vadd.f32 %v1051, 1.0
    %v1154 = vadd.f32 %v1053, 1.0
    %v1155 = vadd.f32 %v1055, 1.0
    %v1156 = vadd.f32 %v1057, 1.0
    %v1157 = vadd.f32 %v1059, 1.0
    %v1158 = vadd.f32 %v1061, 1.0
    %v1159 = vadd.f32 %v1063, 1.0
    %v1160 = vadd.f32 %v1065, 1.0
    %v1161 = vadd.f32 %v1067, 1.0
    %v1162 = vadd.f32 %v1069, 1.0
    %v1163 = vadd.f32 %v1071, 1.0
    %v1164 = vadd.f32 %v1073, 1.0
    %v1165 = vadd.f32 %v1075, 1.0
    %v1166 = vadd.f32 %v1077, 1.0
    %v1167 = vadd.f32 %v1079, 1.0
    %v1168 = vadd.f32 %v1081, 1.0
    %v1169 = vadd.f32 %v1083, 1.0
    %v1170 = vadd.f32 %v1085, 1.0
    %v1171 = vadd.f32 %v1087, 1.0
    %v1172 = vadd.f32 %v1089, 1.0
    %v1173 = vadd.f32 %v1091, 1.0
    %v1174 = vadd.f32 %v1093, 1.0
    %v1175 = vadd.f32 %v1095, 1.0
    %v1176 = vadd.f32 %v1097, 1.0
    %v1177 = vadd.f32 %v1099, 1.0
    %v1178 = vadd.f32 %v1101, 1.0
    %v1179 = vadd.f32 %v1103, 1.0
    %v1180 = vadd.f32 %v1105, 1.0
    %v1181 = vadd.f32 %v1107, 1.0
    %v1182 = vadd.f32 %v1109, 1.0
    %v1183 = vadd.f32 %v1111, 1.0
    %v1184 = vadd.f32 %v1113, 1.0
    %v1185 = vadd.f32 %v1115, 1.0
    %v1186 = vadd.f32 %v1117, 1.0
    %v1187 = vadd.f32 %v1119, 1.0
    %v1188 = vadd.f32 %v1121, 1.0
    %v1189 = vadd.f32 %v1123, 1.0
    %v1190 = vadd.f32 %v1125, 1.0
    %v1191 = vadd.f32 %v1127, 1.0
    %v1192 = vrcp.pop %v1128
    %v1193 = vmul.f32 1.0, %v1192
    %v1194 = vrcp.pop %v1129
    %v1195 = vmul.f32 1.0, %v1194
    %v1196 = vrcp.pop %v1130
    %v1197 = vmul.f32 1.0, %v1196
    %v1198 = vrcp.pop %v1131
    %v1199 = vmul.f32 1.0, %v1198
    %v1200 = vrcp.pop %v1132
    %v1201 = vmul.f32 1.0, %v1200
    %v1202 = vrcp.pop %v1133
    %v1203 = vmul.f32 1.0, %v1202
    %v1204 = vrcp.pop %v1134
    %v1205 = vmul.f32 1.0, %v1204
    %v1206 = vrcp.pop %v1135
    %v1207 = vmul.f32 1.0, %v1206
    %v1208 = vrcp.pop %v1136
    %v1209 = vmul.f32 1.0, %v1208
    %v1210 = vrcp.pop %v1137
    %v1211 = vmul.f32 1.0, %v1210
    %v1212 = vrcp.pop %v1138
    %v1213 = vmul.f32 1.0, %v1212
    %v1214 = vrcp.pop %v1139
    %v1215 = vmul.f32 1.0, %v1214
    %v1216 = vrcp.pop %v1140
    %v1217 = vmul.f32 1.0, %v1216
    %v1218 = vrcp.pop %v1141
    %v1219 = vmul.f32 1.0, %v1218
    %v1220 = vrcp.pop %v1142
    %v1221 = vmul.f32 1.0, %v1220
    %v1222 = vrcp.pop %v1143
    %v1223 = vmul.f32 1.0, %v1222
    %v1224 = vrcp.pop %v1144
    %v1225 = vmul.f32 1.0, %v1224
    %v1226 = vrcp.pop %v1145
    %v1227 = vmul.f32 1.0, %v1226
    %v1228 = vrcp.pop %v1146
    %v1229 = vmul.f32 1.0, %v1228
    %v1230 = vrcp.pop %v1147
    %v1231 = vmul.f32 1.0, %v1230
    %v1232 = vrcp.pop %v1148
    %v1233 = vmul.f32 1.0, %v1232
    %v1234 = vrcp.pop %v1149
    %v1235 = vmul.f32 1.0, %v1234
    %v1236 = vrcp.pop %v1150
    %v1237 = vmul.f32 1.0, %v1236
    %v1238 = vrcp.pop %v1151
    %v1239 = vmul.f32 1.0, %v1238
    %v1240 = vrcp.pop %v1152
    %v1241 = vmul.f32 1.0, %v1240
    %v1242 = vrcp.pop %v1153
    %v1243 = vmul.f32 1.0, %v1242
    %v1244 = vrcp.pop %v1154
    %v1245 = vmul.f32 1.0, %v1244
    %v1246 = vrcp.pop %v1155
    %v1247 = vmul.f32 1.0, %v1246
    %v1248 = vrcp.pop %v1156
    %v1249 = vmul.f32 1.0, %v1248
    %v1250 = vrcp.pop %v1157
    %v1251 = vmul.f32 1.0, %v1250
    %v1252 = vrcp.pop %v1158
    %v1253 = vmul.f32 1.0, %v1252
    %v1254 = vrcp.pop %v1159
    %v1255 = vmul.f32 1.0, %v1254
    %v1256 = vrcp.pop %v1160
    %v1257 = vmul.f32 1.0, %v1256
    %v1258 = vrcp.pop %v1161
    %v1259 = vmul.f32 1.0, %v1258
    %v1260 = vrcp.pop %v1162
    %v1261 = vmul.f32 1.0, %v1260
    %v1262 = vrcp.pop %v1163
    %v1263 = vmul.f32 1.0, %v1262
    %v1264 = vrcp.pop %v1164
    %v1265 = vmul.f32 1.0, %v1264
    %v1266 = vrcp.pop %v1165
    %v1267 = vmul.f32 1.0, %v1266
    %v1268 = vrcp.pop %v1166
    %v1269 = vmul.f32 1.0, %v1268
    %v1270 = vrcp.pop %v1167
    %v1271 = vmul.f32 1.0, %v1270
    %v1272 = vrcp.pop %v1168
    %v1273 = vmul.f32 1.0, %v1272
    %v1274 = vrcp.pop %v1169
    %v1275 = vmul.f32 1.0, %v1274
    %v1276 = vrcp.pop %v1170
    %v1277 = vmul.f32 1.0, %v1276
    %v1278 = vrcp.pop %v1171
    %v1279 = vmul.f32 1.0, %v1278
    %v1280 = vrcp.pop %v1172
    %v1281 = vmul.f32 1.0, %v1280
    %v1282 = vrcp.pop %v1173
    %v1283 = vmul.f32 1.0, %v1282
    %v1284 = vrcp.pop %v1174
    %v1285 = vmul.f32 1.0, %v1284
    %v1286 = vrcp.pop %v1175
    %v1287 = vmul.f32 1.0, %v1286
    %v1288 = vrcp.pop %v1176
    %v1289 = vmul.f32 1.0, %v1288
    %v1290 = vrcp.pop %v1177
    %v1291 = vmul.f32 1.0, %v1290
    %v1292 = vrcp.pop %v1178
    %v1293 = vmul.f32 1.0, %v1292
    %v1294 = vrcp.pop %v1179
    %v1295 = vmul.f32 1.0, %v1294
    %v1296 = vrcp.pop %v1180
    %v1297 = vmul.f32 1.0, %v1296
    %v1298 = vrcp.pop %v1181
    %v1299 = vmul.f32 1.0, %v1298
    %v1300 = vrcp.pop %v1182
    %v1301 = vmul.f32 1.0, %v1300
    %v1302 = vrcp.pop %v1183
    %v1303 = vmul.f32 1.0, %v1302
    %v1304 = vrcp.pop %v1184
    %v1305 = vmul.f32 1.0, %v1304
    %v1306 = vrcp.pop %v1185
    %v1307 = vmul.f32 1.0, %v1306
    %v1308 = vrcp.pop %v1186
    %v1309 = vmul.f32 1.0, %v1308
    %v1310 = vrcp.pop %v1187
    %v1311 = vmul.f32 1.0, %v1310
    %v1312 = vrcp.pop %v1188
    %v1313 = vmul.f32 1.0, %v1312
    %v1314 = vrcp.pop %v1189
    %v1315 = vmul.f32 1.0, %v1314
    %v1316 = vrcp.pop %v1190
    %v1317 = vmul.f32 1.0, %v1316
    %v1318 = vrcp.pop %v1191
    %v1319 = vmul.f32 1.0, %v1318
    %v1320 = vmul.f32 %v519, %v1193
    %v1321 = vmul.f32 %v521, %v1195
    %v1322 = vmul.f32 %v632, %v1197
    %v1323 = vmul.f32 %v634, %v1199
    %v1324 = vmul.f32 %v523, %v1201
    %v1325 = vmul.f32 %v525, %v1203
    %v1326 = vmul.f32 %v636, %v1205
    %v1327 = vmul.f32 %v638, %v1207
    %v1328 = vmul.f32 %v529, %v1209
    %v1329 = vmul.f32 %v531, %v1211
    %v1330 = vmul.f32 %v642, %v1213
    %v1331 = vmul.f32 %v644, %v1215
    %v1332 = vmul.f32 %v533, %v1217
    %v1333 = vmul.f32 %v535, %v1219
    %v1334 = vmul.f32 %v646, %v1221
    %v1335 = vmul.f32 %v648, %v1223
    %v1336 = vmul.f32 %v539, %v1225
    %v1337 = vmul.f32 %v541, %v1227
    %v1338 = vmul.f32 %v652, %v1229
    %v1339 = vmul.f32 %v654, %v1231
    %v1340 = vmul.f32 %v543, %v1233
    %v1341 = vmul.f32 %v545, %v1235
    %v1342 = vmul.f32 %v656, %v1237
    %v1343 = vmul.f32 %v658, %v1239
    %v1344 = vmul.f32 %v549, %v1241
    %v1345 = vmul.f32 %v551, %v1243
    %v1346 = vmul.f32 %v662, %v1245
    %v1347 = vmul.f32 %v664, %v1247
    %v1348 = vmul.f32 %v553, %v1249
    %v1349 = vmul.f32 %v555, %v1251
    %v1350 = vmul.f32 %v666, %v1253
    %v1351 = vmul.f32 %v668, %v1255
    %v1352 = vmul.f32 %v559, %v1257
    %v1353 = vmul.f32 %v561, %v1259
    %v1354 = vmul.f32 %v672, %v1261
    %v1355 = vmul.f32 %v674, %v1263
    %v1356 = vmul.f32 %v563, %v1265
    %v1357 = vmul.f32 %v565, %v1267
    %v1358 = vmul.f32 %v676, %v1269
    %v1359 = vmul.f32 %v678, %v1271
    %v1360 = vmul.f32 %v569, %v1273
    %v1361 = vmul.f32 %v571, %v1275
    %v1362 = vmul.f32 %v682, %v1277
    %v1363 = vmul.f32 %v684, %v1279
    %v1364 = vmul.f32 %v573, %v1281
    %v1365 = vmul.f32 %v575, %v1283
    %v1366 = vmul.f32 %v686, %v1285
    %v1367 = vmul.f32 %v688, %v1287
    %v1368 = vmul.f32 %v579, %v1289
    %v1369 = vmul.f32 %v581, %v1291
    %v1370 = vmul.f32 %v692, %v1293
    %v1371 = vmul.f32 %v694, %v1295
    %v1372 = vmul.f32 %v583, %v1297
    %v1373 = vmul.f32 %v585, %v1299
    %v1374 = vmul.f32 %v696, %v1301
    %v1375 = vmul.f32 %v698, %v1303
    %v1376 = vmul.f32 %v589, %v1305
    %v1377 = vmul.f32 %v591, %v1307
    %v1378 = vmul.f32 %v702, %v1309
    %v1379 = vmul.f32 %v704, %v1311
    %v1380 = vmul.f32 %v593, %v1313
    %v1381 = vmul.f32 %v595, %v1315
    %v1382 = vmul.f32 %v706, %v1317
    %v1383 = vmul.f32 %v708, %v1319
    %v1384 = vmul.f32 %v1320, %v745
    %v1385 = vmul.f32 %v1321, %v747
    %v1386 = vmul.f32 %v1322, %v858
    %v1387 = vmul.f32 %v1323, %v860
    %v1388 = vmul.f32 %v1324, %v749
    %v1389 = vmul.f32 %v1325, %v751
    %v1390 = vmul.f32 %v1326, %v862
    %v1391 = vmul.f32 %v1327, %v864
    %v1392 = vmul.f32 %v1328, %v755
    %v1393 = vmul.f32 %v1329, %v757
    %v1394 = vmul.f32 %v1330, %v868
    %v1395 = vmul.f32 %v1331, %v870
    %v1396 = vmul.f32 %v1332, %v759
    %v1397 = vmul.f32 %v1333, %v761
    %v1398 = vmul.f32 %v1334, %v872
    %v1399 = vmul.f32 %v1335, %v874
    %v1400 = vmul.f32 %v1336, %v765
    %v1401 = vmul.f32 %v1337, %v767
    %v1402 = vmul.f32 %v1338, %v878
    %v1403 = vmul.f32 %v1339, %v880
    %v1404 = vmul.f32 %v1340, %v769
    %v1405 = vmul.f32 %v1341, %v771
    %v1406 = vmul.f32 %v1342, %v882
    %v1407 = vmul.f32 %v1343, %v884
    %v1408 = vmul.f32 %v1344, %v775
    %v1409 = vmul.f32 %v1345, %v777
    %v1410 = vmul.f32 %v1346, %v888
    %v1411 = vmul.f32 %v1347, %v890
    %v1412 = vmul.f32 %v1348, %v779
    %v1413 = vmul.f32 %v1349, %v781
    %v1414 = vmul.f32 %v1350, %v892
    %v1415 = vmul.f32 %v1351, %v894
    %v1416 = vmul.f32 %v1352, %v785
    %v1417 = vmul.f32 %v1353, %v787
    %v1418 = vmul.f32 %v1354, %v898
    %v1419 = vmul.f32 %v1355, %v900
    %v1420 = vmul.f32 %v1356, %v789
    %v1421 = vmul.f32 %v1357, %v791
    %v1422 = vmul.f32 %v1358, %v902
    %v1423 = vmul.f32 %v1359, %v904
    %v1424 = vmul.f32 %v1360, %v795
    %v1425 = vmul.f32 %v1361, %v797
    %v1426 = vmul.f32 %v1362, %v908
    %v1427 = vmul.f32 %v1363, %v910
    %v1428 = vmul.f32 %v1364, %v799
    %v1429 = vmul.f32 %v1365, %v801
    %v1430 = vmul.f32 %v1366, %v912
    %v1431 = vmul.f32 %v1367, %v914
    %v1432 = vmul.f32 %v1368, %v805
    %v1433 = vmul.f32 %v1369, %v807
    %v1434 = vmul.f32 %v1370, %v918
    %v1435 = vmul.f32 %v1371, %v920
    %v1436 = vmul.f32 %v1372, %v809
    %v1437 = vmul.f32 %v1373, %v811
    %v1438 = vmul.f32 %v1374, %v922
    %v1439 = vmul.f32 %v1375, %v924
    %v1440 = vmul.f32 %v1376, %v815
    %v1441 = vmul.f32 %v1377, %v817
    %v1442 = vmul.f32 %v1378, %v928
    %v1443 = vmul.f32 %v1379, %v930
    %v1444 = vmul.f32 %v1380, %v819
    %v1445 = vmul.f32 %v1381, %v821
    %v1446 = vmul.f32 %v1382, %v932
    %v1447 = vmul.f32 %v1383, %v934
    %v1448 = vld [vmem:[#allocation2] sm:$0xff]
    %v1449 = vld [vmem:[#allocation2 + $0x8] sm:$0xff]
    %v1450 = vld [vmem:[#allocation2 + $0x10] sm:$0xff]
    %v1451 = vld [vmem:[#allocation2 + $0x18] sm:$0xff]
    %v1452 = vld [vmem:[#allocation2 + $0x20] sm:$0xff]
    %v1453 = vld [vmem:[#allocation2 + $0x28] sm:$0xff]
    %v1454 = vld [vmem:[#allocation2 + $0x30] sm:$0xff]
    %v1455 = vld [vmem:[#allocation2 + $0x38] sm:$0xff]
    %v1456 = vld [vmem:[#allocation2 + $0x40] sm:$0xff]
    %v1457 = vld [vmem:[#allocation2 + $0x48] sm:$0xff]
    %v1458 = vld [vmem:[#allocation2 + $0x50] sm:$0xff]
    %v1459 = vld [vmem:[#allocation2 + $0x58] sm:$0xff]
    %v1460 = vld [vmem:[#allocation2 + $0x60] sm:$0xff]
    %v1461 = vld [vmem:[#allocation2 + $0x68] sm:$0xff]
    %v1462 = vld [vmem:[#allocation2 + $0x70] sm:$0xff]
    %v1463 = vld [vmem:[#allocation2 + $0x78] sm:$0xff]
    %v1464 = vpack.c.bf16 %v1388, %v1384
    %v1465 = vpack.c.bf16 %v1389, %v1385
    %v1466 = vpack.c.bf16 %v1390, %v1386
    %v1467 = vpack.c.bf16 %v1391, %v1387
    %v1468 = vpack.c.bf16 %v1396, %v1392
    %v1469 = vpack.c.bf16 %v1397, %v1393
    %v1470 = vpack.c.bf16 %v1398, %v1394
    %v1471 = vpack.c.bf16 %v1399, %v1395
    %v1472 = vpack.c.bf16 %v1404, %v1400
    %v1473 = vpack.c.bf16 %v1405, %v1401
    %v1474 = vpack.c.bf16 %v1406, %v1402
    %v1475 = vpack.c.bf16 %v1407, %v1403
    %v1476 = vpack.c.bf16 %v1412, %v1408
    %v1477 = vpack.c.bf16 %v1413, %v1409
    %v1478 = vpack.c.bf16 %v1414, %v1410
    %v1479 = vpack.c.bf16 %v1415, %v1411
    %v1480 = vpack.c.bf16 %v1420, %v1416
    %v1481 = vpack.c.bf16 %v1421, %v1417
    %v1482 = vpack.c.bf16 %v1422, %v1418
    %v1483 = vpack.c.bf16 %v1423, %v1419
    %v1484 = vpack.c.bf16 %v1428, %v1424
    %v1485 = vpack.c.bf16 %v1429, %v1425
    %v1486 = vpack.c.bf16 %v1430, %v1426
    %v1487 = vpack.c.bf16 %v1431, %v1427
    %v1488 = vpack.c.bf16 %v1436, %v1432
    %v1489 = vpack.c.bf16 %v1437, %v1433
    %v1490 = vpack.c.bf16 %v1438, %v1434
    %v1491 = vpack.c.bf16 %v1439, %v1435
    %v1492 = vpack.c.bf16 %v1444, %v1440
    %v1493 = vpack.c.bf16 %v1445, %v1441
    %v1494 = vpack.c.bf16 %v1446, %v1442
    %v1495 = vpack.c.bf16 %v1447, %v1443
    %v1496 = vld [vmem:[%s2] sm:$0xf]
    %v1497 = vld [vmem:[%s2 + $0x4] sm:$0xf]
    %v1498 = vld [vmem:[%s2 + $0x8] sm:$0xf]
    %v1499 = vld [vmem:[%s2 + $0xc] sm:$0xf]
    %v1500 = vld [vmem:[%s2 + $0x10] sm:$0xf]
    %v1501 = vld [vmem:[%s2 + $0x14] sm:$0xf]
    %v1502 = vld [vmem:[%s2 + $0x18] sm:$0xf]
    %v1503 = vld [vmem:[%s2 + $0x1c] sm:$0xf]
    %v1504 = vld [vmem:[%s2 + $0x20] sm:$0xf]
    %v1505 = vld [vmem:[%s2 + $0x24] sm:$0xf]
    %v1506 = vld [vmem:[%s2 + $0x28] sm:$0xf]
    %v1507 = vld [vmem:[%s2 + $0x2c] sm:$0xf]
    %v1508 = vld [vmem:[%s2 + $0x30] sm:$0xf]
    %v1509 = vld [vmem:[%s2 + $0x34] sm:$0xf]
    %v1510 = vld [vmem:[%s2 + $0x38] sm:$0xf]
    %v1511 = vld [vmem:[%s2 + $0x3c] sm:$0xf]
    %v1512 = vld [vmem:[%s2 + $0x40] sm:$0xf]
    %v1513 = vld [vmem:[%s2 + $0x44] sm:$0xf]
    %v1514 = vld [vmem:[%s2 + $0x48] sm:$0xf]
    %v1515 = vld [vmem:[%s2 + $0x4c] sm:$0xf]
    %v1516 = vld [vmem:[%s2 + $0x50] sm:$0xf]
    %v1517 = vld [vmem:[%s2 + $0x54] sm:$0xf]
    %v1518 = vld [vmem:[%s2 + $0x58] sm:$0xf]
    %v1519 = vld [vmem:[%s2 + $0x5c] sm:$0xf]
    %v1520 = vld [vmem:[%s2 + $0x60] sm:$0xf]
    %v1521 = vld [vmem:[%s2 + $0x64] sm:$0xf]
    %v1522 = vld [vmem:[%s2 + $0x68] sm:$0xf]
    %v1523 = vld [vmem:[%s2 + $0x6c] sm:$0xf]
    %v1524 = vld [vmem:[%s2 + $0x70] sm:$0xf]
    %v1525 = vld [vmem:[%s2 + $0x74] sm:$0xf]
    %v1526 = vld [vmem:[%s2 + $0x78] sm:$0xf]
    %v1527 = vld [vmem:[%s2 + $0x7c] sm:$0xf]
    %v1528 = vld [vmem:[%s2 + $0x80] sm:$0xf]
    %v1529 = vld [vmem:[%s2 + $0x84] sm:$0xf]
    %v1530 = vld [vmem:[%s2 + $0x88] sm:$0xf]
    %v1531 = vld [vmem:[%s2 + $0x8c] sm:$0xf]
    %v1532 = vld [vmem:[%s2 + $0x90] sm:$0xf]
    %v1533 = vld [vmem:[%s2 + $0x94] sm:$0xf]
    %v1534 = vld [vmem:[%s2 + $0x98] sm:$0xf]
    %v1535 = vld [vmem:[%s2 + $0x9c] sm:$0xf]
    %v1536 = vld [vmem:[%s2 + $0xa0] sm:$0xf]
    %v1537 = vld [vmem:[%s2 + $0xa4] sm:$0xf]
    %v1538 = vld [vmem:[%s2 + $0xa8] sm:$0xf]
    %v1539 = vld [vmem:[%s2 + $0xac] sm:$0xf]
    %v1540 = vld [vmem:[%s2 + $0xb0] sm:$0xf]
    %v1541 = vld [vmem:[%s2 + $0xb4] sm:$0xf]
    %v1542 = vld [vmem:[%s2 + $0xb8] sm:$0xf]
    %v1543 = vld [vmem:[%s2 + $0xbc] sm:$0xf]
    %v1544 = vld [vmem:[%s2 + $0xc0] sm:$0xf]
    %v1545 = vld [vmem:[%s2 + $0xc4] sm:$0xf]
    %v1546 = vld [vmem:[%s2 + $0xc8] sm:$0xf]
    %v1547 = vld [vmem:[%s2 + $0xcc] sm:$0xf]
    %v1548 = vld [vmem:[%s2 + $0xd0] sm:$0xf]
    %v1549 = vld [vmem:[%s2 + $0xd4] sm:$0xf]
    %v1550 = vld [vmem:[%s2 + $0xd8] sm:$0xf]
    %v1551 = vld [vmem:[%s2 + $0xdc] sm:$0xf]
    %v1552 = vld [vmem:[%s2 + $0xe0] sm:$0xf]
    %v1553 = vld [vmem:[%s2 + $0xe4] sm:$0xf]
    %v1554 = vld [vmem:[%s2 + $0xe8] sm:$0xf]
    %v1555 = vld [vmem:[%s2 + $0xec] sm:$0xf]
    %v1556 = vld [vmem:[%s2 + $0xf0] sm:$0xf]
    %v1557 = vld [vmem:[%s2 + $0xf4] sm:$0xf]
    %v1558 = vld [vmem:[%s2 + $0xf8] sm:$0xf]
    %v1559 = vld [vmem:[%s2 + $0xfc] sm:$0xf]
    %v1624 = vunpack.c.l.b16 %v1496
    %v1625 = vunpack.c.l.b16 %v1497
    %v1626 = vunpack.c.l.b16 %v1498
    %v1627 = vunpack.c.l.b16 %v1499
    %v1628 = vunpack.c.l.b16 %v1500
    %v1629 = vunpack.c.l.b16 %v1501
    %v1630 = vunpack.c.l.b16 %v1502
    %v1631 = vunpack.c.l.b16 %v1503
    %v1632 = vunpack.c.l.b16 %v1504
    %v1633 = vunpack.c.l.b16 %v1505
    %v1634 = vunpack.c.l.b16 %v1506
    %v1635 = vunpack.c.l.b16 %v1507
    %v1636 = vunpack.c.l.b16 %v1508
    %v1637 = vunpack.c.l.b16 %v1509
    %v1638 = vunpack.c.l.b16 %v1510
    %v1639 = vunpack.c.l.b16 %v1511
    %v1640 = vunpack.c.l.b16 %v1512
    %v1641 = vunpack.c.l.b16 %v1513
    %v1642 = vunpack.c.l.b16 %v1514
    %v1643 = vunpack.c.l.b16 %v1515
    %v1644 = vunpack.c.l.b16 %v1516
    %v1645 = vunpack.c.l.b16 %v1517
    %v1646 = vunpack.c.l.b16 %v1518
    %v1647 = vunpack.c.l.b16 %v1519
    %v1648 = vunpack.c.l.b16 %v1520
    %v1649 = vunpack.c.l.b16 %v1521
    %v1650 = vunpack.c.l.b16 %v1522
    %v1651 = vunpack.c.l.b16 %v1523
    %v1652 = vunpack.c.l.b16 %v1524
    %v1653 = vunpack.c.l.b16 %v1525
    %v1654 = vunpack.c.l.b16 %v1526
    %v1655 = vunpack.c.l.b16 %v1527
    %v1656 = vunpack.c.l.b16 %v1528
    %v1657 = vunpack.c.l.b16 %v1529
    %v1658 = vunpack.c.l.b16 %v1530
    %v1659 = vunpack.c.l.b16 %v1531
    %v1660 = vunpack.c.l.b16 %v1532
    %v1661 = vunpack.c.l.b16 %v1533
    %v1662 = vunpack.c.l.b16 %v1534
    %v1663 = vunpack.c.l.b16 %v1535
    %v1664 = vunpack.c.l.b16 %v1536
    %v1665 = vunpack.c.l.b16 %v1537
    %v1666 = vunpack.c.l.b16 %v1538
    %v1667 = vunpack.c.l.b16 %v1539
    %v1668 = vunpack.c.l.b16 %v1540
    %v1669 = vunpack.c.l.b16 %v1541
    %v1670 = vunpack.c.l.b16 %v1542
    %v1671 = vunpack.c.l.b16 %v1543
    %v1672 = vunpack.c.l.b16 %v1544
    %v1673 = vunpack.c.l.b16 %v1545
    %v1674 = vunpack.c.l.b16 %v1546
    %v1675 = vunpack.c.l.b16 %v1547
    %v1676 = vunpack.c.l.b16 %v1548
    %v1677 = vunpack.c.l.b16 %v1549
    %v1678 = vunpack.c.l.b16 %v1550
    %v1679 = vunpack.c.l.b16 %v1551
    %v1680 = vunpack.c.l.b16 %v1552
    %v1681 = vunpack.c.l.b16 %v1553
    %v1682 = vunpack.c.l.b16 %v1554
    %v1683 = vunpack.c.l.b16 %v1555
    %v1684 = vunpack.c.l.b16 %v1556
    %v1685 = vunpack.c.l.b16 %v1557
    %v1686 = vunpack.c.l.b16 %v1558
    %v1687 = vunpack.c.l.b16 %v1559
    %v1688 = vpack.c.b16 %v1625, %v1624
    %v1689 = vpack.c.b16 %v1627, %v1626
    %v1690 = vpack.c.b16 %v1629, %v1628
    %v1691 = vpack.c.b16 %v1631, %v1630
    %v1692 = vpack.c.b16 %v1633, %v1632
    %v1693 = vpack.c.b16 %v1635, %v1634
    %v1694 = vpack.c.b16 %v1637, %v1636
    %v1695 = vpack.c.b16 %v1639, %v1638
    %v1696 = vpack.c.b16 %v1641, %v1640
    %v1697 = vpack.c.b16 %v1643, %v1642
    %v1698 = vpack.c.b16 %v1645, %v1644
    %v1699 = vpack.c.b16 %v1647, %v1646
    %v1700 = vpack.c.b16 %v1649, %v1648
    %v1701 = vpack.c.b16 %v1651, %v1650
    %v1702 = vpack.c.b16 %v1653, %v1652
    %v1703 = vpack.c.b16 %v1655, %v1654
    %v1704 = vpack.c.b16 %v1657, %v1656
    %v1705 = vpack.c.b16 %v1659, %v1658
    %v1706 = vpack.c.b16 %v1661, %v1660
    %v1707 = vpack.c.b16 %v1663, %v1662
    %v1708 = vpack.c.b16 %v1665, %v1664
    %v1709 = vpack.c.b16 %v1667, %v1666
    %v1710 = vpack.c.b16 %v1669, %v1668
    %v1711 = vpack.c.b16 %v1671, %v1670
    %v1712 = vpack.c.b16 %v1673, %v1672
    %v1713 = vpack.c.b16 %v1675, %v1674
    %v1714 = vpack.c.b16 %v1677, %v1676
    %v1715 = vpack.c.b16 %v1679, %v1678
    %v1716 = vpack.c.b16 %v1681, %v1680
    %v1717 = vpack.c.b16 %v1683, %v1682
    %v1718 = vpack.c.b16 %v1685, %v1684
    %v1719 = vpack.c.b16 %v1687, %v1686
    %1752 = vmatprep.subr.bf16.mxu0 0
    %1753 = vmatpush1.bf16.msra.mxu0 %v1688
    %1754 = vmatprep.subr.bf16.mxu0 0
    %1755 = vmatpush1.bf16.msra.mxu0 %v1689
    %1756 = vmatprep.subr.bf16.mxu0 0
    %1757 = vmatpush1.bf16.msra.mxu0 %v1690
    %1758 = vmatprep.subr.bf16.mxu0 0
    %1759 = vmatpush1.bf16.msra.mxu0 %v1691
    %1760 = vmatprep.subr.bf16.mxu0 0
    %1761 = vmatpush1.bf16.msra.mxu0 %v1692
    %1762 = vmatprep.subr.bf16.mxu0 0
    %1763 = vmatpush1.bf16.msra.mxu0 %v1693
    %1764 = vmatprep.subr.bf16.mxu0 0
    %1765 = vmatpush1.bf16.msra.mxu0 %v1694
    %1766 = vmatprep.subr.bf16.mxu0 0
    %1767 = vmatpush1.bf16.msra.mxu0 %v1695
    %1768 = vmatprep.subr.bf16.mxu0 0
    %1769 = vmatpush1.bf16.msra.mxu0 %v1696
    %1770 = vmatprep.subr.bf16.mxu0 0
    %1771 = vmatpush1.bf16.msra.mxu0 %v1697
    %1772 = vmatprep.subr.bf16.mxu0 0
    %1773 = vmatpush1.bf16.msra.mxu0 %v1698
    %1774 = vmatprep.subr.bf16.mxu0 0
    %1775 = vmatpush1.bf16.msra.mxu0 %v1699
    %1776 = vmatprep.subr.bf16.mxu0 0
    %1777 = vmatpush1.bf16.msra.mxu0 %v1700
    %1778 = vmatprep.subr.bf16.mxu0 0
    %1779 = vmatpush1.bf16.msra.mxu0 %v1701
    %1780 = vmatprep.subr.bf16.mxu0 0
    %1781 = vmatpush1.bf16.msra.mxu0 %v1702
    %1782 = vmatprep.subr.bf16.mxu0 0
    %1783 = vmatpush1.bf16.msra.mxu0 %v1703
    %1784 = vmatprep.mubr.bf16.mxu0 %v1465
    %1785 = vmatmul.mubr.bf16.gmra.mrb[0].mxu0 %v1464
    %v1786 = vpop.f32.mrb[0].mxu0
    %v1787 = vadd.f32 0.0, %v1786
    %v1788 = vpop.f32.mrb[0].mxu0
    %v1789 = vpop.f32.mrb[0].mxu0
    %v1790 = vadd.f32 0.0, %v1789
    %v1791 = vpop.f32.mrb[0].mxu0
    %1792 = vmatprep.mubr.bf16.mxu0 %v1469
    %1793 = vmatmul.mubr.bf16.gmra.mrb[0].mxu0 %v1468
    %v1794 = vpop.f32.mrb[0].mxu0
    %v1795 = vadd.f32 0.0, %v1794
    %v1796 = vpop.f32.mrb[0].mxu0
    %v1797 = vpop.f32.mrb[0].mxu0
    %v1798 = vadd.f32 0.0, %v1797
    %v1799 = vpop.f32.mrb[0].mxu0
    %1800 = vmatprep.mubr.bf16.mxu0 %v1473
    %1801 = vmatmul.mubr.bf16.gmra.mrb[0].mxu0 %v1472
    %v1802 = vpop.f32.mrb[0].mxu0
    %v1803 = vadd.f32 0.0, %v1802
    %v1804 = vpop.f32.mrb[0].mxu0
    %v1805 = vpop.f32.mrb[0].mxu0
    %v1806 = vadd.f32 0.0, %v1805
    %v1807 = vpop.f32.mrb[0].mxu0
    %1808 = vmatprep.mubr.bf16.mxu0 %v1477
    %1809 = vmatmul.mubr.bf16.gmra.mrb[0].mxu0 %v1476
    %v1810 = vpop.f32.mrb[0].mxu0
    %v1811 = vadd.f32 0.0, %v1810
    %v1812 = vpop.f32.mrb[0].mxu0
    %v1813 = vpop.f32.mrb[0].mxu0
    %v1814 = vadd.f32 0.0, %v1813
    %v1815 = vpop.f32.mrb[0].mxu0
    %1816 = vmatprep.mubr.bf16.mxu0 %v1481
    %1817 = vmatmul.mubr.bf16.gmra.mrb[0].mxu0 %v1480
    %v1818 = vpop.f32.mrb[0].mxu0
    %v1819 = vadd.f32 0.0, %v1818
    %v1820 = vpop.f32.mrb[0].mxu0
    %v1821 = vpop.f32.mrb[0].mxu0
    %v1822 = vadd.f32 0.0, %v1821
    %v1823 = vpop.f32.mrb[0].mxu0
    %1824 = vmatprep.mubr.bf16.mxu0 %v1485
    %1825 = vmatmul.mubr.bf16.gmra.mrb[0].mxu0 %v1484
    %v1826 = vpop.f32.mrb[0].mxu0
    %v1827 = vadd.f32 0.0, %v1826
    %v1828 = vpop.f32.mrb[0].mxu0
    %v1829 = vpop.f32.mrb[0].mxu0
    %v1830 = vadd.f32 0.0, %v1829
    %v1831 = vpop.f32.mrb[0].mxu0
    %1832 = vmatprep.mubr.bf16.mxu0 %v1489
    %1833 = vmatmul.mubr.bf16.gmra.mrb[0].mxu0 %v1488
    %v1834 = vpop.f32.mrb[0].mxu0
    %v1835 = vadd.f32 0.0, %v1834
    %v1836 = vpop.f32.mrb[0].mxu0
    %v1837 = vpop.f32.mrb[0].mxu0
    %v1838 = vadd.f32 0.0, %v1837
    %v1839 = vpop.f32.mrb[0].mxu0
    %1840 = vmatprep.mubr.bf16.mxu0 %v1493
    %1841 = vmatmul.mubr.bf16.gmra.mrb[0].mxu0 %v1492
    %v1842 = vpop.f32.mrb[0].mxu0
    %v1843 = vadd.f32 0.0, %v1842
    %v1844 = vpop.f32.mrb[0].mxu0
    %v1845 = vpop.f32.mrb[0].mxu0
    %v1846 = vadd.f32 0.0, %v1845
    %v1847 = vpop.f32.mrb[0].mxu0
    %1848 = vdwg.mxu0
    %1849 = vmatprep.subr.bf16.mxu0 0
    %1850 = vmatpush1.bf16.msra.mxu0 %v1704
    %1851 = vmatprep.subr.bf16.mxu0 0
    %1852 = vmatpush1.bf16.msra.mxu0 %v1705
    %1853 = vmatprep.subr.bf16.mxu0 0
    %1854 = vmatpush1.bf16.msra.mxu0 %v1706
    %1855 = vmatprep.subr.bf16.mxu0 0
    %1856 = vmatpush1.bf16.msra.mxu0 %v1707
    %1857 = vmatprep.subr.bf16.mxu0 0
    %1858 = vmatpush1.bf16.msra.mxu0 %v1708
    %1859 = vmatprep.subr.bf16.mxu0 0
    %1860 = vmatpush1.bf16.msra.mxu0 %v1709
    %1861 = vmatprep.subr.bf16.mxu0 0
    %1862 = vmatpush1.bf16.msra.mxu0 %v1710
    %1863 = vmatprep.subr.bf16.mxu0 0
    %1864 = vmatpush1.bf16.msra.mxu0 %v1711
    %1865 = vmatprep.subr.bf16.mxu0 0
    %1866 = vmatpush1.bf16.msra.mxu0 %v1712
    %1867 = vmatprep.subr.bf16.mxu0 0
    %1868 = vmatpush1.bf16.msra.mxu0 %v1713
    %1869 = vmatprep.subr.bf16.mxu0 0
    %1870 = vmatpush1.bf16.msra.mxu0 %v1714
    %1871 = vmatprep.subr.bf16.mxu0 0
    %1872 = vmatpush1.bf16.msra.mxu0 %v1715
    %1873 = vmatprep.subr.bf16.mxu0 0
    %1874 = vmatpush1.bf16.msra.mxu0 %v1716
    %1875 = vmatprep.subr.bf16.mxu0 0
    %1876 = vmatpush1.bf16.msra.mxu0 %v1717
    %1877 = vmatprep.subr.bf16.mxu0 0
    %1878 = vmatpush1.bf16.msra.mxu0 %v1718
    %1879 = vmatprep.subr.bf16.mxu0 0
    %1880 = vmatpush1.bf16.msra.mxu0 %v1719
    %1881 = vmatprep.mubr.bf16.mxu0 %v1467
    %1882 = vmatmul.mubr.bf16.gmra.mrb[0].mxu0 %v1466
    %v1883 = vpop.f32.mrb[0].mxu0
    %v1884 = vadd.f32 %v1787, %v1883
    %v1885 = vpop.f32.mrb[0].mxu0
    %v1886 = vpop.f32.mrb[0].mxu0
    %v1887 = vadd.f32 %v1790, %v1886
    %v1888 = vpop.f32.mrb[0].mxu0
    %1889 = vmatprep.mubr.bf16.mxu0 %v1471
    %1890 = vmatmul.mubr.bf16.gmra.mrb[0].mxu0 %v1470
    %v1891 = vpop.f32.mrb[0].mxu0
    %v1892 = vadd.f32 %v1795, %v1891
    %v1893 = vpop.f32.mrb[0].mxu0
    %v1894 = vpop.f32.mrb[0].mxu0
    %v1895 = vadd.f32 %v1798, %v1894
    %v1896 = vpop.f32.mrb[0].mxu0
    %1897 = vmatprep.mubr.bf16.mxu0 %v1475
    %1898 = vmatmul.mubr.bf16.gmra.mrb[0].mxu0 %v1474
    %v1899 = vpop.f32.mrb[0].mxu0
    %v1900 = vadd.f32 %v1803, %v1899
    %v1901 = vpop.f32.mrb[0].mxu0
    %v1902 = vpop.f32.mrb[0].mxu0
    %v1903 = vadd.f32 %v1806, %v1902
    %v1904 = vpop.f32.mrb[0].mxu0
    %1905 = vmatprep.mubr.bf16.mxu0 %v1479
    %1906 = vmatmul.mubr.bf16.gmra.mrb[0].mxu0 %v1478
    %v1907 = vpop.f32.mrb[0].mxu0
    %v1908 = vadd.f32 %v1811, %v1907
    %v1909 = vpop.f32.mrb[0].mxu0
    %v1910 = vpop.f32.mrb[0].mxu0
    %v1911 = vadd.f32 %v1814, %v1910
    %v1912 = vpop.f32.mrb[0].mxu0
    %1913 = vmatprep.mubr.bf16.mxu0 %v1483
    %1914 = vmatmul.mubr.bf16.gmra.mrb[0].mxu0 %v1482
    %v1915 = vpop.f32.mrb[0].mxu0
    %v1916 = vadd.f32 %v1819, %v1915
    %v1917 = vpop.f32.mrb[0].mxu0
    %v1918 = vpop.f32.mrb[0].mxu0
    %v1919 = vadd.f32 %v1822, %v1918
    %v1920 = vpop.f32.mrb[0].mxu0
    %1921 = vmatprep.mubr.bf16.mxu0 %v1487
    %1922 = vmatmul.mubr.bf16.gmra.mrb[0].mxu0 %v1486
    %v1923 = vpop.f32.mrb[0].mxu0
    %v1924 = vadd.f32 %v1827, %v1923
    %v1925 = vpop.f32.mrb[0].mxu0
    %v1926 = vpop.f32.mrb[0].mxu0
    %v1927 = vadd.f32 %v1830, %v1926
    %v1928 = vpop.f32.mrb[0].mxu0
    %1929 = vmatprep.mubr.bf16.mxu0 %v1491
    %1930 = vmatmul.mubr.bf16.gmra.mrb[0].mxu0 %v1490
    %v1931 = vpop.f32.mrb[0].mxu0
    %v1932 = vadd.f32 %v1835, %v1931
    %v1933 = vpop.f32.mrb[0].mxu0
    %v1934 = vpop.f32.mrb[0].mxu0
    %v1935 = vadd.f32 %v1838, %v1934
    %v1936 = vpop.f32.mrb[0].mxu0
    %1937 = vmatprep.mubr.bf16.mxu0 %v1495
    %1938 = vmatmul.mubr.bf16.gmra.mrb[0].mxu0 %v1494
    %v1939 = vpop.f32.mrb[0].mxu0
    %v1940 = vadd.f32 %v1843, %v1939
    %v1941 = vpop.f32.mrb[0].mxu0
    %v1942 = vpop.f32.mrb[0].mxu0
    %v1943 = vadd.f32 %v1846, %v1942
    %v1944 = vpop.f32.mrb[0].mxu0
    %1945 = vdwg.mxu0
    %v1946 = vadd.f32 %v1448, %v1884
    %v1947 = vadd.f32 %v1449, %v1887
    %v1948 = vadd.f32 %v1450, %v1892
    %v1949 = vadd.f32 %v1451, %v1895
    %v1950 = vadd.f32 %v1452, %v1900
    %v1951 = vadd.f32 %v1453, %v1903
    %v1952 = vadd.f32 %v1454, %v1908
    %v1953 = vadd.f32 %v1455, %v1911
    %v1954 = vadd.f32 %v1456, %v1916
    %v1955 = vadd.f32 %v1457, %v1919
    %v1956 = vadd.f32 %v1458, %v1924
    %v1957 = vadd.f32 %v1459, %v1927
    %v1958 = vadd.f32 %v1460, %v1932
    %v1959 = vadd.f32 %v1461, %v1935
    %v1960 = vadd.f32 %v1462, %v1940
    %v1961 = vadd.f32 %v1463, %v1943
    %1962 = vst [vmem:[#allocation2] sm:$0xff] %v1946
    %1963 = vst [vmem:[#allocation2 + $0x8] sm:$0xff] %v1947
    %1964 = vst [vmem:[#allocation2 + $0x10] sm:$0xff] %v1948
    %1965 = vst [vmem:[#allocation2 + $0x18] sm:$0xff] %v1949
    %1966 = vst [vmem:[#allocation2 + $0x20] sm:$0xff] %v1950
    %1967 = vst [vmem:[#allocation2 + $0x28] sm:$0xff] %v1951
    %1968 = vst [vmem:[#allocation2 + $0x30] sm:$0xff] %v1952
    %1969 = vst [vmem:[#allocation2 + $0x38] sm:$0xff] %v1953
    %1970 = vst [vmem:[#allocation2 + $0x40] sm:$0xff] %v1954
    %1971 = vst [vmem:[#allocation2 + $0x48] sm:$0xff] %v1955
    %1972 = vst [vmem:[#allocation2 + $0x50] sm:$0xff] %v1956
    %1973 = vst [vmem:[#allocation2 + $0x58] sm:$0xff] %v1957
    %1974 = vst [vmem:[#allocation2 + $0x60] sm:$0xff] %v1958
    %1975 = vst [vmem:[#allocation2 + $0x68] sm:$0xff] %v1959
    %1976 = vst [vmem:[#allocation2 + $0x70] sm:$0xff] %v1960
    %1977 = vst [vmem:[#allocation2 + $0x78] sm:$0xff] %v1961
    // Predicated region
    $region18: #{llama_mlp.1} parent=1 // pred_check
      %p1978 = pneg %p16
    $region19: #{llama_mlp.1} parent=1 // pred_check_branch
      %1980 = sbr.rel (%p1978) target = $region21
    $region20: #{llama_mlp.1} parent=1 // pred_region
      %v1981 = vld [vmem:[#allocation2] sm:$0xff]
      %v1982 = vld [vmem:[#allocation2 + $0x8] sm:$0xff]
      %v1983 = vld [vmem:[#allocation2 + $0x10] sm:$0xff]
      %v1984 = vld [vmem:[#allocation2 + $0x18] sm:$0xff]
      %v1985 = vld [vmem:[#allocation2 + $0x20] sm:$0xff]
      %v1986 = vld [vmem:[#allocation2 + $0x28] sm:$0xff]
      %v1987 = vld [vmem:[#allocation2 + $0x30] sm:$0xff]
      %v1988 = vld [vmem:[#allocation2 + $0x38] sm:$0xff]
      %v1989 = vld [vmem:[#allocation2 + $0x40] sm:$0xff]
      %v1990 = vld [vmem:[#allocation2 + $0x48] sm:$0xff]
      %v1991 = vld [vmem:[#allocation2 + $0x50] sm:$0xff]
      %v1992 = vld [vmem:[#allocation2 + $0x58] sm:$0xff]
      %v1993 = vld [vmem:[#allocation2 + $0x60] sm:$0xff]
      %v1994 = vld [vmem:[#allocation2 + $0x68] sm:$0xff]
      %v1995 = vld [vmem:[#allocation2 + $0x70] sm:$0xff]
      %v1996 = vld [vmem:[#allocation2 + $0x78] sm:$0xff]
      %1997 = vst [vmem:[#allocation3] sm:$0xff] %v1981
      %1998 = vst [vmem:[#allocation3 + $0x8] sm:$0xff] %v1982
      %1999 = vst [vmem:[#allocation3 + $0x10] sm:$0xff] %v1983
      %2000 = vst [vmem:[#allocation3 + $0x18] sm:$0xff] %v1984
      %2001 = vst [vmem:[#allocation3 + $0x20] sm:$0xff] %v1985
      %2002 = vst [vmem:[#allocation3 + $0x28] sm:$0xff] %v1986
      %2003 = vst [vmem:[#allocation3 + $0x30] sm:$0xff] %v1987
      %2004 = vst [vmem:[#allocation3 + $0x38] sm:$0xff] %v1988
      %2005 = vst [vmem:[#allocation3 + $0x40] sm:$0xff] %v1989
      %2006 = vst [vmem:[#allocation3 + $0x48] sm:$0xff] %v1990
      %2007 = vst [vmem:[#allocation3 + $0x50] sm:$0xff] %v1991
      %2008 = vst [vmem:[#allocation3 + $0x58] sm:$0xff] %v1992
      %2009 = vst [vmem:[#allocation3 + $0x60] sm:$0xff] %v1993
      %2010 = vst [vmem:[#allocation3 + $0x68] sm:$0xff] %v1994
      %2011 = vst [vmem:[#allocation3 + $0x70] sm:$0xff] %v1995
      %2012 = vst [vmem:[#allocation3 + $0x78] sm:$0xff] %v1996
    $region21: #{llama_mlp.1} parent=1 // pred_fallthru
      _
    // Predicated region
    $region22: #{llama_mlp.1} parent=1 // pred_check
      _
    $region23: #{llama_mlp.1} parent=1 // pred_check_branch
      %2014 = sbr.rel (0) target = $region25
    $region24: #{llama_mlp.1} parent=1 // pred_region
      %s2016 = ssub.s32 2048, 2048
      %2017 = vsyncadd [#allocation4], %s2016
      %s2018 = sshll.u32 [#allocation3], 4
      %s2019 = int_to_ptr.vmem [resolvable:$true] %s2018
      %2024 = dma.vmem_to_hbm [thread:$0]  %s2019, 2048, %s3, [#allocation4], 128, 128, 8
    $region25: #{llama_mlp.1} parent=1 // pred_fallthru
      _
    // Predicated region
    $region26: #{llama_mlp.1} parent=1 // pred_check
      _
    $region27: #{llama_mlp.1} parent=1 // pred_check_branch
      %2026 = sbr.rel (0) target = $region29
    $region28: #{llama_mlp.1} parent=1 // pred_region
      %2027 = dma.done [#allocation4], 2048
    $region29: #{llama_mlp.1} parent=1 // pred_fallthru
      _
    %2028 = vsyncpa [#allocation4], 1

</llo_original>
